<compile_context>
chip_gen: v7x
topology: tpu7x:2x2x1
jax: 0.10.0
libtpu: 0.0.40
codegen_flags: <defaults>
</compile_context>

<pallas_src>
import functools

import jax
import jax.numpy as jnp
from jax.experimental import pallas as pl
from jax.experimental.pallas import tpu as pltpu

HIDDEN = 512


def _round_up(x, m):
    return (x + m - 1) // m * m


def _decoder_kernel(z_ref, w1_ref, b1_ref, w2_ref, b2_ref,
                    w3_ref, b3_ref, w4_ref, b4_ref, out_ref):
    # bf16 operands -> native MXU rate; f32 accumulation via preferred_element_type.
    # Bias add + tanh in f32 (v5e has no bf16 VPU/EUP; also bounds numeric drift).
    bf16 = jnp.bfloat16
    h = jnp.dot(z_ref[...].astype(bf16), w1_ref[...],
                preferred_element_type=jnp.float32)
    h = jnp.tanh(h + b1_ref[...])
    h = jnp.dot(h.astype(bf16), w2_ref[...],
                preferred_element_type=jnp.float32)
    h = jnp.tanh(h + b2_ref[...])
    h = jnp.dot(h.astype(bf16), w3_ref[...],
                preferred_element_type=jnp.float32)
    h = jnp.tanh(h + b3_ref[...])
    h = jnp.dot(h.astype(bf16), w4_ref[...],
                preferred_element_type=jnp.float32)
    out_ref[...] = (h + b4_ref[...]).astype(out_ref.dtype)


@functools.partial(jax.jit, static_argnames=("tile_b",))
def decoder_forward(z, params, tile_b=512):
    """z: (B, z_dim) float32. params: dict of f32 weights/biases. Returns (B, x_dim) f32."""
    B, z_dim = z.shape
    x_dim = params["w4"].shape[1]

    # Batch tile: as large as requested, clamped to the (8-padded) batch, multiple of 8.
    tile_b = max(8, min(tile_b, _round_up(B, 8)))
    B_pad = _round_up(B, tile_b)
    # Lane-dense output: pad last dim to a multiple of 128 (unmasked stores + full MXU
    # column tile for the last matmul); sliced back off below.
    x_pad = _round_up(x_dim, 128)

    z_p = z if B_pad == B else jnp.pad(z, ((0, B_pad - B), (0, 0)))

    # Weights in bf16: native MXU throughput and half the HBM bytes. Biases stay f32.
    w1 = params["w1"].astype(jnp.bfloat16)
    w2 = params["w2"].astype(jnp.bfloat16)
    w3 = params["w3"].astype(jnp.bfloat16)
    w4 = params["w4"].astype(jnp.bfloat16)
    b1, b2, b3, b4 = params["b1"], params["b2"], params["b3"], params["b4"]
    if x_pad != x_dim:
        w4 = jnp.pad(w4, ((0, 0), (0, x_pad - x_dim)))
        b4 = jnp.pad(b4, ((0, 0), (0, x_pad - x_dim)))

    def full_spec(shape):
        # Whole array resident in VMEM; constant block index => no re-DMA across steps.
        return pl.BlockSpec(shape, lambda i: (0,) * len(shape))

    grid = (B_pad // tile_b,)

    flops = 2 * B_pad * (z_dim * HIDDEN + 2 * HIDDEN * HIDDEN + HIDDEN * x_pad)
    transcendentals = 3 * B_pad * HIDDEN
    bytes_accessed = (
        B_pad * z_dim * 4                                   # input (f32)
        + B_pad * x_pad * 4                                 # output (f32)
        + (z_dim * HIDDEN + 2 * HIDDEN * HIDDEN + HIDDEN * x_pad) * 2   # weights (bf16)
        + (3 * HIDDEN + x_pad) * 4                          # biases (f32)
    )

    out = pl.pallas_call(
        _decoder_kernel,
        out_shape=jax.ShapeDtypeStruct((B_pad, x_pad), jnp.float32),
        grid_spec=pltpu.PrefetchScalarGridSpec(
            num_scalar_prefetch=0,
            grid=grid,
            in_specs=[
                pl.BlockSpec((tile_b, z_dim), lambda i: (i, 0)),   # batch tile of z
                full_spec(w1.shape), full_spec(b1.shape),
                full_spec(w2.shape), full_spec(b2.shape),
                full_spec(w3.shape), full_spec(b3.shape),
                full_spec(w4.shape), full_spec(b4.shape),
            ],
            out_specs=pl.BlockSpec((tile_b, x_pad), lambda i: (i, 0)),
        ),
        compiler_params=pltpu.CompilerParams(
            # 'parallel' lets the batch axis shard across TensorCores on multi-TC chips.
            dimension_semantics=("parallel",)),
        cost_estimate=pl.CostEstimate(
            flops=flops,
            transcendentals=transcendentals,
            bytes_accessed=bytes_accessed),
    )(z_p, w1, b1, w2, b2, w3, b3, w4, b4)

    return out[:B, :x_dim]


def init_decoder_params(key, x_dim, z_dim):
    """Deterministic init matching PyTorch nn.Linear default (U(-1/sqrt(fan_in), ...)).
    Weights stored as (in_features, out_features); biases as (1, out_features)."""
    dims = [(z_dim, HIDDEN), (HIDDEN, HIDDEN), (HIDDEN, HIDDEN), (HIDDEN, x_dim)]
    params = {}
    for idx, (fan_in, fan_out) in enumerate(dims, start=1):
        key, kw, kb = jax.random.split(key, 3)
        bound = 1.0 / jnp.sqrt(fan_in)
        params[f"w{idx}"] = jax.random.uniform(
            kw, (fan_in, fan_out), jnp.float32, -bound, bound)
        params[f"b{idx}"] = jax.random.uniform(
            kb, (1, fan_out), jnp.float32, -bound, bound)
    return params


def decoder_reference(z, params):
    h = jnp.tanh(z @ params["w1"] + params["b1"])
    h = jnp.tanh(h @ params["w2"] + params["b2"])
    h = jnp.tanh(h @ params["w3"] + params["b3"])
    return h @ params["w4"] + params["b4"]


if __name__ == "__main__":
    key = jax.random.PRNGKey(0)

    # Small demo shapes (module implies z -> 512 -> 512 -> 512 -> x).
    B, z_dim, x_dim = 8, 32, 64
    kz, kp = jax.random.split(key)
    z = jax.random.normal(kz, (B, z_dim), jnp.float32)
    params = init_decoder_params(kp, x_dim=x_dim, z_dim=z_dim)

    out = jax.block_until_ready(decoder_forward(z, params))
    ref = decoder_reference(z, params)
    assert out.shape == (B, x_dim)
    # bf16 matmul inputs with f32 accumulation -> loosened tolerance vs. f32 reference.
    assert jnp.allclose(out, ref, atol=5e-2, rtol=5e-2), "mismatch vs reference (small)"

    # Second check exercising the big batch tile + batch/lane padding paths (B=600 -> 1024).
    B2 = 600
    z2 = jax.random.normal(jax.random.PRNGKey(1), (B2, z_dim), jnp.float32)
    out2 = jax.block_until_ready(decoder_forward(z2, params))
    ref2 = decoder_reference(z2, params)
    assert out2.shape == (B2, x_dim)
    assert jnp.allclose(out2, ref2, atol=5e-2, rtol=5e-2), "mismatch vs reference (tiled)"

    print("KERNEL_OK")
</pallas_src>

<mosaic_0001>
module attributes {stable_mosaic.version = 11 : i64} {
  func.func @_decoder_kernel(%arg0: i32, %arg1: memref<8x32xf32, #tpu.memory_space<vmem>>, %arg2: memref<32x512xbf16, #tpu.memory_space<vmem>>, %arg3: memref<1x512xf32, #tpu.memory_space<vmem>>, %arg4: memref<512x512xbf16, #tpu.memory_space<vmem>>, %arg5: memref<1x512xf32, #tpu.memory_space<vmem>>, %arg6: memref<512x512xbf16, #tpu.memory_space<vmem>>, %arg7: memref<1x512xf32, #tpu.memory_space<vmem>>, %arg8: memref<512x128xbf16, #tpu.memory_space<vmem>>, %arg9: memref<1x128xf32, #tpu.memory_space<vmem>>, %arg10: memref<8x128xf32, #tpu.memory_space<vmem>>) attributes {dimension_semantics = [#tpu.dimension_semantics<parallel>], iteration_bounds = array<i64: 1>, scalar_prefetch = 0 : i64, scratch_operands = 0 : i64, tpu.core_type = #tpu.core_type<tc>, window_params = [{transform_indices = @transform_0, window_bounds = array<i64: 8, 32>}, {pipeline_mode = #tpu.pipeline_mode<synchronous>, transform_indices = @transform_1, window_bounds = array<i64: 32, 512>}, {pipeline_mode = #tpu.pipeline_mode<synchronous>, transform_indices = @transform_2, window_bounds = array<i64: 1, 512>}, {pipeline_mode = #tpu.pipeline_mode<synchronous>, transform_indices = @transform_3, window_bounds = array<i64: 512, 512>}, {pipeline_mode = #tpu.pipeline_mode<synchronous>, transform_indices = @transform_4, window_bounds = array<i64: 1, 512>}, {pipeline_mode = #tpu.pipeline_mode<synchronous>, transform_indices = @transform_5, window_bounds = array<i64: 512, 512>}, {pipeline_mode = #tpu.pipeline_mode<synchronous>, transform_indices = @transform_6, window_bounds = array<i64: 1, 512>}, {pipeline_mode = #tpu.pipeline_mode<synchronous>, transform_indices = @transform_7, window_bounds = array<i64: 512, 128>}, {pipeline_mode = #tpu.pipeline_mode<synchronous>, transform_indices = @transform_8, window_bounds = array<i64: 1, 128>}, {transform_indices = @transform_9, window_bounds = array<i64: 8, 128>}]} {
    %c0 = arith.constant 0 : index
    %c0_0 = arith.constant 0 : index
    %0 = vector.load %arg1[%c0, %c0_0] : memref<8x32xf32, #tpu.memory_space<vmem>>, vector<8x32xf32>
    %1 = arith.truncf %0 : vector<8x32xf32> to vector<8x32xbf16>
    %c0_1 = arith.constant 0 : index
    %c0_2 = arith.constant 0 : index
    %2 = vector.load %arg2[%c0_1, %c0_2] : memref<32x512xbf16, #tpu.memory_space<vmem>>, vector<32x512xbf16>
    %cst = arith.constant dense<0.000000e+00> : vector<8x512xf32>
    %3 = tpu.matmul %1, %2, %cst {dimension_numbers = #tpu.dot_dimension_numbers<[1], [0], [0], [1], [0, 0, 1, 1], [], []>} : vector<8x32xbf16>, vector<32x512xbf16>, vector<8x512xf32> -> vector<8x512xf32>
    %c0_3 = arith.constant 0 : index
    %c0_4 = arith.constant 0 : index
    %4 = vector.load %arg3[%c0_3, %c0_4] : memref<1x512xf32, #tpu.memory_space<vmem>>, vector<1x512xf32>
    %5 = vector.broadcast %4 : vector<1x512xf32> to vector<8x512xf32>
    %6 = arith.addf %3, %5 : vector<8x512xf32>
    %7 = math.tanh %6 : vector<8x512xf32>
    %8 = arith.truncf %7 : vector<8x512xf32> to vector<8x512xbf16>
    %c0_5 = arith.constant 0 : index
    %c0_6 = arith.constant 0 : index
    %9 = vector.load %arg4[%c0_5, %c0_6] : memref<512x512xbf16, #tpu.memory_space<vmem>>, vector<512x512xbf16>
    %cst_7 = arith.constant dense<0.000000e+00> : vector<8x512xf32>
    %10 = tpu.matmul %8, %9, %cst_7 {dimension_numbers = #tpu.dot_dimension_numbers<[1], [0], [0], [1], [0, 0, 1, 1], [], []>} : vector<8x512xbf16>, vector<512x512xbf16>, vector<8x512xf32> -> vector<8x512xf32>
    %c0_8 = arith.constant 0 : index
    %c0_9 = arith.constant 0 : index
    %11 = vector.load %arg5[%c0_8, %c0_9] : memref<1x512xf32, #tpu.memory_space<vmem>>, vector<1x512xf32>
    %12 = vector.broadcast %11 : vector<1x512xf32> to vector<8x512xf32>
    %13 = arith.addf %10, %12 : vector<8x512xf32>
    %14 = math.tanh %13 : vector<8x512xf32>
    %15 = arith.truncf %14 : vector<8x512xf32> to vector<8x512xbf16>
    %c0_10 = arith.constant 0 : index
    %c0_11 = arith.constant 0 : index
    %16 = vector.load %arg6[%c0_10, %c0_11] : memref<512x512xbf16, #tpu.memory_space<vmem>>, vector<512x512xbf16>
    %cst_12 = arith.constant dense<0.000000e+00> : vector<8x512xf32>
    %17 = tpu.matmul %15, %16, %cst_12 {dimension_numbers = #tpu.dot_dimension_numbers<[1], [0], [0], [1], [0, 0, 1, 1], [], []>} : vector<8x512xbf16>, vector<512x512xbf16>, vector<8x512xf32> -> vector<8x512xf32>
    %c0_13 = arith.constant 0 : index
    %c0_14 = arith.constant 0 : index
    %18 = vector.load %arg7[%c0_13, %c0_14] : memref<1x512xf32, #tpu.memory_space<vmem>>, vector<1x512xf32>
    %19 = vector.broadcast %18 : vector<1x512xf32> to vector<8x512xf32>
    %20 = arith.addf %17, %19 : vector<8x512xf32>
    %21 = math.tanh %20 : vector<8x512xf32>
    %22 = arith.truncf %21 : vector<8x512xf32> to vector<8x512xbf16>
    %c0_15 = arith.constant 0 : index
    %c0_16 = arith.constant 0 : index
    %23 = vector.load %arg8[%c0_15, %c0_16] : memref<512x128xbf16, #tpu.memory_space<vmem>>, vector<512x128xbf16>
    %cst_17 = arith.constant dense<0.000000e+00> : vector<8x128xf32>
    %24 = tpu.matmul %22, %23, %cst_17 {dimension_numbers = #tpu.dot_dimension_numbers<[1], [0], [0], [1], [0, 0, 1, 1], [], []>} : vector<8x512xbf16>, vector<512x128xbf16>, vector<8x128xf32> -> vector<8x128xf32>
    %c0_18 = arith.constant 0 : index
    %c0_19 = arith.constant 0 : index
    %25 = vector.load %arg9[%c0_18, %c0_19] : memref<1x128xf32, #tpu.memory_space<vmem>>, vector<1x128xf32>
    %26 = vector.broadcast %25 : vector<1x128xf32> to vector<8x128xf32>
    %27 = arith.addf %24, %26 : vector<8x128xf32>
    %c0_20 = arith.constant 0 : index
    %c0_21 = arith.constant 0 : index
    %28 = vector.load %arg10[%c0_20, %c0_21] : memref<8x128xf32, #tpu.memory_space<vmem>>, vector<8x128xf32>
    tpu.vector_store %arg10[%c0_20, %c0_21], %27 {strides = array<i32>} : memref<8x128xf32, #tpu.memory_space<vmem>>, vector<8x128xf32>,
    return
  }
  func.func @transform_0(%arg0: i32) -> (i32, i32) {
    %c0_i32 = arith.constant 0 : i32
    %c0_i32_0 = arith.constant 0 : i32
    return %arg0, %c0_i32 : i32, i32
  }
  func.func @transform_1(%arg0: i32) -> (i32, i32) {
    %c0_i32 = arith.constant 0 : i32
    %c0_i32_0 = arith.constant 0 : i32
    %c0_i32_1 = arith.constant 0 : i32
    return %c0_i32, %c0_i32_0 : i32, i32
  }
  func.func @transform_2(%arg0: i32) -> (i32, i32) {
    %c0_i32 = arith.constant 0 : i32
    %c0_i32_0 = arith.constant 0 : i32
    %c0_i32_1 = arith.constant 0 : i32
    return %c0_i32, %c0_i32_0 : i32, i32
  }
  func.func @transform_3(%arg0: i32) -> (i32, i32) {
    %c0_i32 = arith.constant 0 : i32
    %c0_i32_0 = arith.constant 0 : i32
    %c0_i32_1 = arith.constant 0 : i32
    return %c0_i32, %c0_i32_0 : i32, i32
  }
  func.func @transform_4(%arg0: i32) -> (i32, i32) {
    %c0_i32 = arith.constant 0 : i32
    %c0_i32_0 = arith.constant 0 : i32
    %c0_i32_1 = arith.constant 0 : i32
    return %c0_i32, %c0_i32_0 : i32, i32
  }
  func.func @transform_5(%arg0: i32) -> (i32, i32) {
    %c0_i32 = arith.constant 0 : i32
    %c0_i32_0 = arith.constant 0 : i32
    %c0_i32_1 = arith.constant 0 : i32
    return %c0_i32, %c0_i32_0 : i32, i32
  }
  func.func @transform_6(%arg0: i32) -> (i32, i32) {
    %c0_i32 = arith.constant 0 : i32
    %c0_i32_0 = arith.constant 0 : i32
    %c0_i32_1 = arith.constant 0 : i32
    return %c0_i32, %c0_i32_0 : i32, i32
  }
  func.func @transform_7(%arg0: i32) -> (i32, i32) {
    %c0_i32 = arith.constant 0 : i32
    %c0_i32_0 = arith.constant 0 : i32
    %c0_i32_1 = arith.constant 0 : i32
    return %c0_i32, %c0_i32_0 : i32, i32
  }
  func.func @transform_8(%arg0: i32) -> (i32, i32) {
    %c0_i32 = arith.constant 0 : i32
    %c0_i32_0 = arith.constant 0 : i32
    %c0_i32_1 = arith.constant 0 : i32
    return %c0_i32, %c0_i32_0 : i32, i32
  }
  func.func @transform_9(%arg0: i32) -> (i32, i32) {
    %c0_i32 = arith.constant 0 : i32
    %c0_i32_0 = arith.constant 0 : i32
    return %arg0, %c0_i32 : i32, i32
  }
}

</mosaic_0001>

<llo_original>
// kernel: decoder_forward.1
$region0: #{decoder_forward.1}
  #allocation0 [shape = 'u32[]', space=smem, size = 0x4, offset = 0x4, fixed_abs, tag = 'smem constant byte address 0x4 - core index']
  #allocation1 [shape = 'u32[144,128]{1,0:T(1,128)}', space=vmem, size = 0x12000, scoped, tag = 'internal scratch']
  %s0 = inlined_call_operand.vmem [shape: f32[8,32], index: 0, kind: input, shape index: {}]
  %s1 = inlined_call_operand.vmem [shape: bf16[32,512], index: 1, kind: input, shape index: {}]
  %s2 = inlined_call_operand.vmem [shape: f32[1,512], index: 2, kind: input, shape index: {}]
  %s3 = inlined_call_operand.vmem [shape: bf16[512,512], index: 3, kind: input, shape index: {}]
  %s4 = inlined_call_operand.vmem [shape: f32[1,512], index: 4, kind: input, shape index: {}]
  %s5 = inlined_call_operand.vmem [shape: bf16[512,512], index: 5, kind: input, shape index: {}]
  %s6 = inlined_call_operand.vmem [shape: f32[1,512], index: 6, kind: input, shape index: {}]
  %s7 = inlined_call_operand.vmem [shape: bf16[512,128], index: 7, kind: input, shape index: {}]
  %s8 = inlined_call_operand.vmem [shape: f32[1,128], index: 8, kind: input, shape index: {}]
  %s9 = inlined_call_operand.hbm [shape: f32[8,128], index: 9, kind: output, shape index: {}]
  %s10 = sld [smem:[#allocation0]]
  $region46: #{decoder_forward.1} parent=0
    _
  %s12 = ssub.s32 1, %s10
  %s13 = scalar_select 0, %s12, %s10
  $region1: #{decoder_forward.1} parent=0
    #allocation2 [shape = 'u8[4096]{0}', space=vmem, size = 0x1000, scoped, tag = 'output window, operand 0, single buffered']
    #allocation3 [shape = 's32[1]{0}', space=sflag, size = 0x4, scoped, tag = 'scoped memory for decoder_forward.1']
    %14 = vsyncpa [#allocation3], 0
    // Predicated region
    $region2: #{decoder_forward.1} parent=1 // pred_check
      _
    $region3: #{decoder_forward.1} parent=1 // pred_check_branch
      %16 = sbr.rel (0) target = $region5
    $region4: #{decoder_forward.1} parent=1 // pred_region
      _
    $region5: #{decoder_forward.1} parent=1 // pred_fallthru
      _
    // Predicated region
    $region6: #{decoder_forward.1} parent=1 // pred_check
      _
    $region7: #{decoder_forward.1} parent=1 // pred_check_branch
      %18 = sbr.rel (0) target = $region9
    $region8: #{decoder_forward.1} parent=1 // pred_region
      _
    $region9: #{decoder_forward.1} parent=1 // pred_fallthru
      _
    // Predicated region
    $region10: #{decoder_forward.1} parent=1 // pred_check
      _
    $region11: #{decoder_forward.1} parent=1 // pred_check_branch
      %20 = sbr.rel (0) target = $region13
    $region12: #{decoder_forward.1} parent=1 // pred_region
      _
    $region13: #{decoder_forward.1} parent=1 // pred_fallthru
      _
    // Predicated region
    $region14: #{decoder_forward.1} parent=1 // pred_check
      _
    $region15: #{decoder_forward.1} parent=1 // pred_check_branch
      %22 = sbr.rel (0) target = $region17
    $region16: #{decoder_forward.1} parent=1 // pred_region
      _
    $region17: #{decoder_forward.1} parent=1 // pred_fallthru
      _
    // Predicated region
    $region18: #{decoder_forward.1} parent=1 // pred_check
      _
    $region19: #{decoder_forward.1} parent=1 // pred_check_branch
      %24 = sbr.rel (0) target = $region21
    $region20: #{decoder_forward.1} parent=1 // pred_region
      _
    $region21: #{decoder_forward.1} parent=1 // pred_fallthru
      _
    // Predicated region
    $region22: #{decoder_forward.1} parent=1 // pred_check
      _
    $region23: #{decoder_forward.1} parent=1 // pred_check_branch
      %26 = sbr.rel (0) target = $region25
    $region24: #{decoder_forward.1} parent=1 // pred_region
      _
    $region25: #{decoder_forward.1} parent=1 // pred_fallthru
      _
    // Predicated region
    $region26: #{decoder_forward.1} parent=1 // pred_check
      _
    $region27: #{decoder_forward.1} parent=1 // pred_check_branch
      %28 = sbr.rel (0) target = $region29
    $region28: #{decoder_forward.1} parent=1 // pred_region
      _
    $region29: #{decoder_forward.1} parent=1 // pred_fallthru
      _
    // Predicated region
    $region30: #{decoder_forward.1} parent=1 // pred_check
      _
    $region31: #{decoder_forward.1} parent=1 // pred_check_branch
      %30 = sbr.rel (0) target = $region33
    $region32: #{decoder_forward.1} parent=1 // pred_region
      _
    $region33: #{decoder_forward.1} parent=1 // pred_fallthru
      _
    // Predicated region
    $region34: #{decoder_forward.1} parent=1 // pred_check
      _
    $region35: #{decoder_forward.1} parent=1 // pred_check_branch
      %32 = sbr.rel (0) target = $region37
    $region36: #{decoder_forward.1} parent=1 // pred_region
      _
    $region37: #{decoder_forward.1} parent=1 // pred_fallthru
      _
    %v34 = vld [vmem:[%s0] sm:$0xff]
    %v35 = vpack.c.bf16 %v34, %v34
    %v36 = vld [vmem:[%s1] sm:$0xff]
    %v37 = vld [vmem:[%s1 + $0x8] sm:$0xff]
    %v38 = vld [vmem:[%s1 + $0x10] sm:$0xff]
    %v39 = vld [vmem:[%s1 + $0x18] sm:$0xff]
    %v40 = vld [vmem:[%s1 + $0x20] sm:$0xff]
    %v41 = vld [vmem:[%s1 + $0x28] sm:$0xff]
    %v42 = vld [vmem:[%s1 + $0x30] sm:$0xff]
    %v43 = vld [vmem:[%s1 + $0x38] sm:$0xff]
    %v44 = vld [vmem:[%s2] sm:$0xf]
    %v46 = vlaneseq
    %v47 = vshrl.u32 %v46, 7
    %v48 = vsub.s32 0, %v47
    %v49 = vrot.slane %v44, %v48
    %v50 = vlaneseq
    %v51 = vshrl.u32 %v50, 7
    %v52 = vsub.s32 1, %v51
    %v53 = vrot.slane %v44, %v52
    %v54 = vlaneseq
    %v55 = vshrl.u32 %v54, 7
    %v56 = vsub.s32 2, %v55
    %v57 = vrot.slane %v44, %v56
    %v58 = vlaneseq
    %v59 = vshrl.u32 %v58, 7
    %v60 = vsub.s32 3, %v59
    %v61 = vrot.slane %v44, %v60
    %v74 = vunpack.c.l.b16 %v36
    %v75 = vunpack.c.h.b16 %v36
    %v76 = vunpack.c.l.b16 %v37
    %v77 = vunpack.c.h.b16 %v37
    %v78 = vunpack.c.l.b16 %v38
    %v79 = vunpack.c.h.b16 %v38
    %v80 = vunpack.c.l.b16 %v39
    %v81 = vunpack.c.h.b16 %v39
    %v82 = vunpack.c.l.b16 %v40
    %v83 = vunpack.c.h.b16 %v40
    %v84 = vunpack.c.l.b16 %v41
    %v85 = vunpack.c.h.b16 %v41
    %v86 = vunpack.c.l.b16 %v42
    %v87 = vunpack.c.h.b16 %v42
    %v88 = vunpack.c.l.b16 %v43
    %v89 = vunpack.c.h.b16 %v43
    %v90 = vpack.c.b16 %v78, %v74
    %v91 = vpack.c.b16 %v79, %v75
    %v92 = vpack.c.b16 %v80, %v76
    %v93 = vpack.c.b16 %v81, %v77
    %v94 = vpack.c.b16 %v86, %v82
    %v95 = vpack.c.b16 %v87, %v83
    %v96 = vpack.c.b16 %v88, %v84
    %v97 = vpack.c.b16 %v89, %v85
    %vm106 = vcmask 261120
    %v108 = vsel %vm106, %v35, 0
    %110 = vmatprep.subr.bf16.mxu0 %v91
    %111 = vmatpush1.bf16.msra.mxu0 %v90
    %112 = vmatprep.subr.bf16.mxu0 %v95
    %113 = vmatpush1.bf16.msra.mxu0 %v94
    %114 = vmatprep.subr.bf16.mxu0 0
    %115 = vmatpush1.bf16.msra.mxu0 0
    %116 = vmatprep.subr.bf16.mxu0 0
    %117 = vmatpush1.bf16.msra.mxu0 0
    %118 = vmatprep.subr.bf16.mxu0 0
    %119 = vmatpush1.bf16.msra.mxu0 0
    %120 = vmatprep.subr.bf16.mxu0 0
    %121 = vmatpush1.bf16.msra.mxu0 0
    %122 = vmatprep.subr.bf16.mxu0 0
    %123 = vmatpush1.bf16.msra.mxu0 0
    %124 = vmatprep.subr.bf16.mxu0 0
    %125 = vmatpush1.bf16.msra.mxu0 0
    %126 = vmatprep.subr.bf16.mxu0 0
    %127 = vmatpush1.bf16.msra.mxu0 0
    %128 = vmatprep.subr.bf16.mxu0 0
    %129 = vmatpush1.bf16.msra.mxu0 0
    %130 = vmatprep.subr.bf16.mxu0 0
    %131 = vmatpush1.bf16.msra.mxu0 0
    %132 = vmatprep.subr.bf16.mxu0 0
    %133 = vmatpush1.bf16.msra.mxu0 0
    %134 = vmatprep.subr.bf16.mxu0 0
    %135 = vmatpush1.bf16.msra.mxu0 0
    %136 = vmatprep.subr.bf16.mxu0 0
    %137 = vmatpush1.bf16.msra.mxu0 0
    %138 = vmatprep.subr.bf16.mxu0 0
    %139 = vmatpush1.bf16.msra.mxu0 0
    %140 = vmatprep.subr.bf16.mxu0 0
    %141 = vmatpush1.bf16.msra.mxu0 0
    %142 = vmatprep.mubr.bf16.mxu0 0
    %143 = vmatmul.mubr.bf16.gmra.mrb[0].mxu0 %v108
    %v144 = vpop.f32.mrb[0].mxu0
    %v145 = vadd.f32 %v49, %v144
    %v146 = vpop.f32.mrb[0].mxu0
    %v147 = vadd.f32 %v53, %v146
    %v148 = vpop.f32.mrb[0].mxu0
    %v149 = vpop.f32.mrb[0].mxu0
    %150 = vdwg.mxu0
    %151 = vmatprep.subr.bf16.mxu0 %v93
    %152 = vmatpush1.bf16.msra.mxu0 %v92
    %153 = vmatprep.subr.bf16.mxu0 %v97
    %154 = vmatpush1.bf16.msra.mxu0 %v96
    %155 = vmatprep.subr.bf16.mxu0 0
    %156 = vmatpush1.bf16.msra.mxu0 0
    %157 = vmatprep.subr.bf16.mxu0 0
    %158 = vmatpush1.bf16.msra.mxu0 0
    %159 = vmatprep.subr.bf16.mxu0 0
    %160 = vmatpush1.bf16.msra.mxu0 0
    %161 = vmatprep.subr.bf16.mxu0 0
    %162 = vmatpush1.bf16.msra.mxu0 0
    %163 = vmatprep.subr.bf16.mxu0 0
    %164 = vmatpush1.bf16.msra.mxu0 0
    %165 = vmatprep.subr.bf16.mxu0 0
    %166 = vmatpush1.bf16.msra.mxu0 0
    %167 = vmatprep.subr.bf16.mxu0 0
    %168 = vmatpush1.bf16.msra.mxu0 0
    %169 = vmatprep.subr.bf16.mxu0 0
    %170 = vmatpush1.bf16.msra.mxu0 0
    %171 = vmatprep.subr.bf16.mxu0 0
    %172 = vmatpush1.bf16.msra.mxu0 0
    %173 = vmatprep.subr.bf16.mxu0 0
    %174 = vmatpush1.bf16.msra.mxu0 0
    %175 = vmatprep.subr.bf16.mxu0 0
    %176 = vmatpush1.bf16.msra.mxu0 0
    %177 = vmatprep.subr.bf16.mxu0 0
    %178 = vmatpush1.bf16.msra.mxu0 0
    %179 = vmatprep.subr.bf16.mxu0 0
    %180 = vmatpush1.bf16.msra.mxu0 0
    %181 = vmatprep.subr.bf16.mxu0 0
    %182 = vmatpush1.bf16.msra.mxu0 0
    %183 = vmatprep.mubr.bf16.mxu0 0
    %184 = vmatmul.mubr.bf16.gmra.mrb[0].mxu0 %v108
    %v185 = vpop.f32.mrb[0].mxu0
    %v186 = vadd.f32 %v57, %v185
    %v187 = vpop.f32.mrb[0].mxu0
    %v188 = vadd.f32 %v61, %v187
    %v189 = vpop.f32.mrb[0].mxu0
    %v190 = vpop.f32.mrb[0].mxu0
    %191 = vdwg.mxu0
    %v192 = vtanh.pop %v145
    %v193 = vtanh.pop %v147
    %v194 = vtanh.pop %v186
    %v195 = vtanh.pop %v188
    %v196 = vpack.c.bf16 %v192, %v192
    %v197 = vpack.c.bf16 %v193, %v193
    %v198 = vpack.c.bf16 %v194, %v194
    %v199 = vpack.c.bf16 %v195, %v195
    %v200 = vld [vmem:[%s3] sm:$0xff]
    %v201 = vld [vmem:[%s3 + $0x8] sm:$0xff]
    %v202 = vld [vmem:[%s3 + $0x10] sm:$0xff]
    %v203 = vld [vmem:[%s3 + $0x18] sm:$0xff]
    %v204 = vld [vmem:[%s3 + $0x20] sm:$0xff]
    %v205 = vld [vmem:[%s3 + $0x28] sm:$0xff]
    %v206 = vld [vmem:[%s3 + $0x30] sm:$0xff]
    %v207 = vld [vmem:[%s3 + $0x38] sm:$0xff]
    %v208 = vld [vmem:[%s3 + $0x40] sm:$0xff]
    %v209 = vld [vmem:[%s3 + $0x48] sm:$0xff]
    %v210 = vld [vmem:[%s3 + $0x50] sm:$0xff]
    %v211 = vld [vmem:[%s3 + $0x58] sm:$0xff]
    %v212 = vld [vmem:[%s3 + $0x60] sm:$0xff]
    %v213 = vld [vmem:[%s3 + $0x68] sm:$0xff]
    %v214 = vld [vmem:[%s3 + $0x70] sm:$0xff]
    %v215 = vld [vmem:[%s3 + $0x78] sm:$0xff]
    %v216 = vld [vmem:[%s3 + $0x80] sm:$0xff]
    %v217 = vld [vmem:[%s3 + $0x88] sm:$0xff]
    %v218 = vld [vmem:[%s3 + $0x90] sm:$0xff]
    %v219 = vld [vmem:[%s3 + $0x98] sm:$0xff]
    %v220 = vld [vmem:[%s3 + $0xa0] sm:$0xff]
    %v221 = vld [vmem:[%s3 + $0xa8] sm:$0xff]
    %v222 = vld [vmem:[%s3 + $0xb0] sm:$0xff]
    %v223 = vld [vmem:[%s3 + $0xb8] sm:$0xff]
    %v224 = vld [vmem:[%s3 + $0xc0] sm:$0xff]
    %v225 = vld [vmem:[%s3 + $0xc8] sm:$0xff]
    %v226 = vld [vmem:[%s3 + $0xd0] sm:$0xff]
    %v227 = vld [vmem:[%s3 + $0xd8] sm:$0xff]
    %v228 = vld [vmem:[%s3 + $0xe0] sm:$0xff]
    %v229 = vld [vmem:[%s3 + $0xe8] sm:$0xff]
    %v230 = vld [vmem:[%s3 + $0xf0] sm:$0xff]
    %v231 = vld [vmem:[%s3 + $0xf8] sm:$0xff]
    %v232 = vld [vmem:[%s3 + $0x100] sm:$0xff]
    %v233 = vld [vmem:[%s3 + $0x108] sm:$0xff]
    %v234 = vld [vmem:[%s3 + $0x110] sm:$0xff]
    %v235 = vld [vmem:[%s3 + $0x118] sm:$0xff]
    %v236 = vld [vmem:[%s3 + $0x120] sm:$0xff]
    %v237 = vld [vmem:[%s3 + $0x128] sm:$0xff]
    %v238 = vld [vmem:[%s3 + $0x130] sm:$0xff]
    %v239 = vld [vmem:[%s3 + $0x138] sm:$0xff]
    %v240 = vld [vmem:[%s3 + $0x140] sm:$0xff]
    %v241 = vld [vmem:[%s3 + $0x148] sm:$0xff]
    %v242 = vld [vmem:[%s3 + $0x150] sm:$0xff]
    %v243 = vld [vmem:[%s3 + $0x158] sm:$0xff]
    %v244 = vld [vmem:[%s3 + $0x160] sm:$0xff]
    %v245 = vld [vmem:[%s3 + $0x168] sm:$0xff]
    %v246 = vld [vmem:[%s3 + $0x170] sm:$0xff]
    %v247 = vld [vmem:[%s3 + $0x178] sm:$0xff]
    %v248 = vld [vmem:[%s3 + $0x180] sm:$0xff]
    %v249 = vld [vmem:[%s3 + $0x188] sm:$0xff]
    %v250 = vld [vmem:[%s3 + $0x190] sm:$0xff]
    %v251 = vld [vmem:[%s3 + $0x198] sm:$0xff]
    %v252 = vld [vmem:[%s3 + $0x1a0] sm:$0xff]
    %v253 = vld [vmem:[%s3 + $0x1a8] sm:$0xff]
    %v254 = vld [vmem:[%s3 + $0x1b0] sm:$0xff]
    %v255 = vld [vmem:[%s3 + $0x1b8] sm:$0xff]
    %v256 = vld [vmem:[%s3 + $0x1c0] sm:$0xff]
    %v257 = vld [vmem:[%s3 + $0x1c8] sm:$0xff]
    %v258 = vld [vmem:[%s3 + $0x1d0] sm:$0xff]
    %v259 = vld [vmem:[%s3 + $0x1d8] sm:$0xff]
    %v260 = vld [vmem:[%s3 + $0x1e0] sm:$0xff]
    %v261 = vld [vmem:[%s3 + $0x1e8] sm:$0xff]
    %v262 = vld [vmem:[%s3 + $0x1f0] sm:$0xff]
    %v263 = vld [vmem:[%s3 + $0x1f8] sm:$0xff]
    %v264 = vld [vmem:[%s3 + $0x200] sm:$0xff]
    %v265 = vld [vmem:[%s3 + $0x208] sm:$0xff]
    %v266 = vld [vmem:[%s3 + $0x210] sm:$0xff]
    %v267 = vld [vmem:[%s3 + $0x218] sm:$0xff]
    %v268 = vld [vmem:[%s3 + $0x220] sm:$0xff]
    %v269 = vld [vmem:[%s3 + $0x228] sm:$0xff]
    %v270 = vld [vmem:[%s3 + $0x230] sm:$0xff]
    %v271 = vld [vmem:[%s3 + $0x238] sm:$0xff]
    %v272 = vld [vmem:[%s3 + $0x240] sm:$0xff]
    %v273 = vld [vmem:[%s3 + $0x248] sm:$0xff]
    %v274 = vld [vmem:[%s3 + $0x250] sm:$0xff]
    %v275 = vld [vmem:[%s3 + $0x258] sm:$0xff]
    %v276 = vld [vmem:[%s3 + $0x260] sm:$0xff]
    %v277 = vld [vmem:[%s3 + $0x268] sm:$0xff]
    %v278 = vld [vmem:[%s3 + $0x270] sm:$0xff]
    %v279 = vld [vmem:[%s3 + $0x278] sm:$0xff]
    %v280 = vld [vmem:[%s3 + $0x280] sm:$0xff]
    %v281 = vld [vmem:[%s3 + $0x288] sm:$0xff]
    %v282 = vld [vmem:[%s3 + $0x290] sm:$0xff]
    %v283 = vld [vmem:[%s3 + $0x298] sm:$0xff]
    %v284 = vld [vmem:[%s3 + $0x2a0] sm:$0xff]
    %v285 = vld [vmem:[%s3 + $0x2a8] sm:$0xff]
    %v286 = vld [vmem:[%s3 + $0x2b0] sm:$0xff]
    %v287 = vld [vmem:[%s3 + $0x2b8] sm:$0xff]
    %v288 = vld [vmem:[%s3 + $0x2c0] sm:$0xff]
    %v289 = vld [vmem:[%s3 + $0x2c8] sm:$0xff]
    %v290 = vld [vmem:[%s3 + $0x2d0] sm:$0xff]
    %v291 = vld [vmem:[%s3 + $0x2d8] sm:$0xff]
    %v292 = vld [vmem:[%s3 + $0x2e0] sm:$0xff]
    %v293 = vld [vmem:[%s3 + $0x2e8] sm:$0xff]
    %v294 = vld [vmem:[%s3 + $0x2f0] sm:$0xff]
    %v295 = vld [vmem:[%s3 + $0x2f8] sm:$0xff]
    %v296 = vld [vmem:[%s3 + $0x300] sm:$0xff]
    %v297 = vld [vmem:[%s3 + $0x308] sm:$0xff]
    %v298 = vld [vmem:[%s3 + $0x310] sm:$0xff]
    %v299 = vld [vmem:[%s3 + $0x318] sm:$0xff]
    %v300 = vld [vmem:[%s3 + $0x320] sm:$0xff]
    %v301 = vld [vmem:[%s3 + $0x328] sm:$0xff]
    %v302 = vld [vmem:[%s3 + $0x330] sm:$0xff]
    %v303 = vld [vmem:[%s3 + $0x338] sm:$0xff]
    %v304 = vld [vmem:[%s3 + $0x340] sm:$0xff]
    %v305 = vld [vmem:[%s3 + $0x348] sm:$0xff]
    %v306 = vld [vmem:[%s3 + $0x350] sm:$0xff]
    %v307 = vld [vmem:[%s3 + $0x358] sm:$0xff]
    %v308 = vld [vmem:[%s3 + $0x360] sm:$0xff]
    %v309 = vld [vmem:[%s3 + $0x368] sm:$0xff]
    %v310 = vld [vmem:[%s3 + $0x370] sm:$0xff]
    %v311 = vld [vmem:[%s3 + $0x378] sm:$0xff]
    %v312 = vld [vmem:[%s3 + $0x380] sm:$0xff]
    %v313 = vld [vmem:[%s3 + $0x388] sm:$0xff]
    %v314 = vld [vmem:[%s3 + $0x390] sm:$0xff]
    %v315 = vld [vmem:[%s3 + $0x398] sm:$0xff]
    %v316 = vld [vmem:[%s3 + $0x3a0] sm:$0xff]
    %v317 = vld [vmem:[%s3 + $0x3a8] sm:$0xff]
    %v318 = vld [vmem:[%s3 + $0x3b0] sm:$0xff]
    %v319 = vld [vmem:[%s3 + $0x3b8] sm:$0xff]
    %v320 = vld [vmem:[%s3 + $0x3c0] sm:$0xff]
    %v321 = vld [vmem:[%s3 + $0x3c8] sm:$0xff]
    %v322 = vld [vmem:[%s3 + $0x3d0] sm:$0xff]
    %v323 = vld [vmem:[%s3 + $0x3d8] sm:$0xff]
    %v324 = vld [vmem:[%s3 + $0x3e0] sm:$0xff]
    %v325 = vld [vmem:[%s3 + $0x3e8] sm:$0xff]
    %v326 = vld [vmem:[%s3 + $0x3f0] sm:$0xff]
    %v327 = vld [vmem:[%s3 + $0x3f8] sm:$0xff]
    %v328 = vld [vmem:[%s4] sm:$0xf]
    %v330 = vlaneseq
    %v331 = vshrl.u32 %v330, 7
    %v332 = vsub.s32 0, %v331
    %v333 = vrot.slane %v328, %v332
    %v334 = vlaneseq
    %v335 = vshrl.u32 %v334, 7
    %v336 = vsub.s32 1, %v335
    %v337 = vrot.slane %v328, %v336
    %v338 = vlaneseq
    %v339 = vshrl.u32 %v338, 7
    %v340 = vsub.s32 2, %v339
    %v341 = vrot.slane %v328, %v340
    %v342 = vlaneseq
    %v343 = vshrl.u32 %v342, 7
    %v344 = vsub.s32 3, %v343
    %v345 = vrot.slane %v328, %v344
    %v478 = vunpack.c.l.b16 %v200
    %v479 = vunpack.c.h.b16 %v200
    %v480 = vunpack.c.l.b16 %v201
    %v481 = vunpack.c.h.b16 %v201
    %v482 = vunpack.c.l.b16 %v202
    %v483 = vunpack.c.h.b16 %v202
    %v484 = vunpack.c.l.b16 %v203
    %v485 = vunpack.c.h.b16 %v203
    %v486 = vunpack.c.l.b16 %v204
    %v487 = vunpack.c.h.b16 %v204
    %v488 = vunpack.c.l.b16 %v205
    %v489 = vunpack.c.h.b16 %v205
    %v490 = vunpack.c.l.b16 %v206
    %v491 = vunpack.c.h.b16 %v206
    %v492 = vunpack.c.l.b16 %v207
    %v493 = vunpack.c.h.b16 %v207
    %v494 = vunpack.c.l.b16 %v208
    %v495 = vunpack.c.h.b16 %v208
    %v496 = vunpack.c.l.b16 %v209
    %v497 = vunpack.c.h.b16 %v209
    %v498 = vunpack.c.l.b16 %v210
    %v499 = vunpack.c.h.b16 %v210
    %v500 = vunpack.c.l.b16 %v211
    %v501 = vunpack.c.h.b16 %v211
    %v502 = vunpack.c.l.b16 %v212
    %v503 = vunpack.c.h.b16 %v212
    %v504 = vunpack.c.l.b16 %v213
    %v505 = vunpack.c.h.b16 %v213
    %v506 = vunpack.c.l.b16 %v214
    %v507 = vunpack.c.h.b16 %v214
    %v508 = vunpack.c.l.b16 %v215
    %v509 = vunpack.c.h.b16 %v215
    %v510 = vunpack.c.l.b16 %v216
    %v511 = vunpack.c.h.b16 %v216
    %v512 = vunpack.c.l.b16 %v217
    %v513 = vunpack.c.h.b16 %v217
    %v514 = vunpack.c.l.b16 %v218
    %v515 = vunpack.c.h.b16 %v218
    %v516 = vunpack.c.l.b16 %v219
    %v517 = vunpack.c.h.b16 %v219
    %v518 = vunpack.c.l.b16 %v220
    %v519 = vunpack.c.h.b16 %v220
    %v520 = vunpack.c.l.b16 %v221
    %v521 = vunpack.c.h.b16 %v221
    %v522 = vunpack.c.l.b16 %v222
    %v523 = vunpack.c.h.b16 %v222
    %v524 = vunpack.c.l.b16 %v223
    %v525 = vunpack.c.h.b16 %v223
    %v526 = vunpack.c.l.b16 %v224
    %v527 = vunpack.c.h.b16 %v224
    %v528 = vunpack.c.l.b16 %v225
    %v529 = vunpack.c.h.b16 %v225
    %v530 = vunpack.c.l.b16 %v226
    %v531 = vunpack.c.h.b16 %v226
    %v532 = vunpack.c.l.b16 %v227
    %v533 = vunpack.c.h.b16 %v227
    %v534 = vunpack.c.l.b16 %v228
    %v535 = vunpack.c.h.b16 %v228
    %v536 = vunpack.c.l.b16 %v229
    %v537 = vunpack.c.h.b16 %v229
    %v538 = vunpack.c.l.b16 %v230
    %v539 = vunpack.c.h.b16 %v230
    %v540 = vunpack.c.l.b16 %v231
    %v541 = vunpack.c.h.b16 %v231
    %v542 = vunpack.c.l.b16 %v232
    %v543 = vunpack.c.h.b16 %v232
    %v544 = vunpack.c.l.b16 %v233
    %v545 = vunpack.c.h.b16 %v233
    %v546 = vunpack.c.l.b16 %v234
    %v547 = vunpack.c.h.b16 %v234
    %v548 = vunpack.c.l.b16 %v235
    %v549 = vunpack.c.h.b16 %v235
    %v550 = vunpack.c.l.b16 %v236
    %v551 = vunpack.c.h.b16 %v236
    %v552 = vunpack.c.l.b16 %v237
    %v553 = vunpack.c.h.b16 %v237
    %v554 = vunpack.c.l.b16 %v238
    %v555 = vunpack.c.h.b16 %v238
    %v556 = vunpack.c.l.b16 %v239
    %v557 = vunpack.c.h.b16 %v239
    %v558 = vunpack.c.l.b16 %v240
    %v559 = vunpack.c.h.b16 %v240
    %v560 = vunpack.c.l.b16 %v241
    %v561 = vunpack.c.h.b16 %v241
    %v562 = vunpack.c.l.b16 %v242
    %v563 = vunpack.c.h.b16 %v242
    %v564 = vunpack.c.l.b16 %v243
    %v565 = vunpack.c.h.b16 %v243
    %v566 = vunpack.c.l.b16 %v244
    %v567 = vunpack.c.h.b16 %v244
    %v568 = vunpack.c.l.b16 %v245
    %v569 = vunpack.c.h.b16 %v245
    %v570 = vunpack.c.l.b16 %v246
    %v571 = vunpack.c.h.b16 %v246
    %v572 = vunpack.c.l.b16 %v247
    %v573 = vunpack.c.h.b16 %v247
    %v574 = vunpack.c.l.b16 %v248
    %v575 = vunpack.c.h.b16 %v248
    %v576 = vunpack.c.l.b16 %v249
    %v577 = vunpack.c.h.b16 %v249
    %v578 = vunpack.c.l.b16 %v250
    %v579 = vunpack.c.h.b16 %v250
    %v580 = vunpack.c.l.b16 %v251
    %v581 = vunpack.c.h.b16 %v251
    %v582 = vunpack.c.l.b16 %v252
    %v583 = vunpack.c.h.b16 %v252
    %v584 = vunpack.c.l.b16 %v253
    %v585 = vunpack.c.h.b16 %v253
    %v586 = vunpack.c.l.b16 %v254
    %v587 = vunpack.c.h.b16 %v254
    %v588 = vunpack.c.l.b16 %v255
    %v589 = vunpack.c.h.b16 %v255
    %v590 = vunpack.c.l.b16 %v256
    %v591 = vunpack.c.h.b16 %v256
    %v592 = vunpack.c.l.b16 %v257
    %v593 = vunpack.c.h.b16 %v257
    %v594 = vunpack.c.l.b16 %v258
    %v595 = vunpack.c.h.b16 %v258
    %v596 = vunpack.c.l.b16 %v259
    %v597 = vunpack.c.h.b16 %v259
    %v598 = vunpack.c.l.b16 %v260
    %v599 = vunpack.c.h.b16 %v260
    %v600 = vunpack.c.l.b16 %v261
    %v601 = vunpack.c.h.b16 %v261
    %v602 = vunpack.c.l.b16 %v262
    %v603 = vunpack.c.h.b16 %v262
    %v604 = vunpack.c.l.b16 %v263
    %v605 = vunpack.c.h.b16 %v263
    %v606 = vunpack.c.l.b16 %v264
    %v607 = vunpack.c.h.b16 %v264
    %v608 = vunpack.c.l.b16 %v265
    %v609 = vunpack.c.h.b16 %v265
    %v610 = vunpack.c.l.b16 %v266
    %v611 = vunpack.c.h.b16 %v266
    %v612 = vunpack.c.l.b16 %v267
    %v613 = vunpack.c.h.b16 %v267
    %v614 = vunpack.c.l.b16 %v268
    %v615 = vunpack.c.h.b16 %v268
    %v616 = vunpack.c.l.b16 %v269
    %v617 = vunpack.c.h.b16 %v269
    %v618 = vunpack.c.l.b16 %v270
    %v619 = vunpack.c.h.b16 %v270
    %v620 = vunpack.c.l.b16 %v271
    %v621 = vunpack.c.h.b16 %v271
    %v622 = vunpack.c.l.b16 %v272
    %v623 = vunpack.c.h.b16 %v272
    %v624 = vunpack.c.l.b16 %v273
    %v625 = vunpack.c.h.b16 %v273
    %v626 = vunpack.c.l.b16 %v274
    %v627 = vunpack.c.h.b16 %v274
    %v628 = vunpack.c.l.b16 %v275
    %v629 = vunpack.c.h.b16 %v275
    %v630 = vunpack.c.l.b16 %v276
    %v631 = vunpack.c.h.b16 %v276
    %v632 = vunpack.c.l.b16 %v277
    %v633 = vunpack.c.h.b16 %v277
    %v634 = vunpack.c.l.b16 %v278
    %v635 = vunpack.c.h.b16 %v278
    %v636 = vunpack.c.l.b16 %v279
    %v637 = vunpack.c.h.b16 %v279
    %v638 = vunpack.c.l.b16 %v280
    %v639 = vunpack.c.h.b16 %v280
    %v640 = vunpack.c.l.b16 %v281
    %v641 = vunpack.c.h.b16 %v281
    %v642 = vunpack.c.l.b16 %v282
    %v643 = vunpack.c.h.b16 %v282
    %v644 = vunpack.c.l.b16 %v283
    %v645 = vunpack.c.h.b16 %v283
    %v646 = vunpack.c.l.b16 %v284
    %v647 = vunpack.c.h.b16 %v284
    %v648 = vunpack.c.l.b16 %v285
    %v649 = vunpack.c.h.b16 %v285
    %v650 = vunpack.c.l.b16 %v286
    %v651 = vunpack.c.h.b16 %v286
    %v652 = vunpack.c.l.b16 %v287
    %v653 = vunpack.c.h.b16 %v287
    %v654 = vunpack.c.l.b16 %v288
    %v655 = vunpack.c.h.b16 %v288
    %v656 = vunpack.c.l.b16 %v289
    %v657 = vunpack.c.h.b16 %v289
    %v658 = vunpack.c.l.b16 %v290
    %v659 = vunpack.c.h.b16 %v290
    %v660 = vunpack.c.l.b16 %v291
    %v661 = vunpack.c.h.b16 %v291
    %v662 = vunpack.c.l.b16 %v292
    %v663 = vunpack.c.h.b16 %v292
    %v664 = vunpack.c.l.b16 %v293
    %v665 = vunpack.c.h.b16 %v293
    %v666 = vunpack.c.l.b16 %v294
    %v667 = vunpack.c.h.b16 %v294
    %v668 = vunpack.c.l.b16 %v295
    %v669 = vunpack.c.h.b16 %v295
    %v670 = vunpack.c.l.b16 %v296
    %v671 = vunpack.c.h.b16 %v296
    %v672 = vunpack.c.l.b16 %v297
    %v673 = vunpack.c.h.b16 %v297
    %v674 = vunpack.c.l.b16 %v298
    %v675 = vunpack.c.h.b16 %v298
    %v676 = vunpack.c.l.b16 %v299
    %v677 = vunpack.c.h.b16 %v299
    %v678 = vunpack.c.l.b16 %v300
    %v679 = vunpack.c.h.b16 %v300
    %v680 = vunpack.c.l.b16 %v301
    %v681 = vunpack.c.h.b16 %v301
    %v682 = vunpack.c.l.b16 %v302
    %v683 = vunpack.c.h.b16 %v302
    %v684 = vunpack.c.l.b16 %v303
    %v685 = vunpack.c.h.b16 %v303
    %v686 = vunpack.c.l.b16 %v304
    %v687 = vunpack.c.h.b16 %v304
    %v688 = vunpack.c.l.b16 %v305
    %v689 = vunpack.c.h.b16 %v305
    %v690 = vunpack.c.l.b16 %v306
    %v691 = vunpack.c.h.b16 %v306
    %v692 = vunpack.c.l.b16 %v307
    %v693 = vunpack.c.h.b16 %v307
    %v694 = vunpack.c.l.b16 %v308
    %v695 = vunpack.c.h.b16 %v308
    %v696 = vunpack.c.l.b16 %v309
    %v697 = vunpack.c.h.b16 %v309
    %v698 = vunpack.c.l.b16 %v310
    %v699 = vunpack.c.h.b16 %v310
    %v700 = vunpack.c.l.b16 %v311
    %v701 = vunpack.c.h.b16 %v311
    %v702 = vunpack.c.l.b16 %v312
    %v703 = vunpack.c.h.b16 %v312
    %v704 = vunpack.c.l.b16 %v313
    %v705 = vunpack.c.h.b16 %v313
    %v706 = vunpack.c.l.b16 %v314
    %v707 = vunpack.c.h.b16 %v314
    %v708 = vunpack.c.l.b16 %v315
    %v709 = vunpack.c.h.b16 %v315
    %v710 = vunpack.c.l.b16 %v316
    %v711 = vunpack.c.h.b16 %v316
    %v712 = vunpack.c.l.b16 %v317
    %v713 = vunpack.c.h.b16 %v317
    %v714 = vunpack.c.l.b16 %v318
    %v715 = vunpack.c.h.b16 %v318
    %v716 = vunpack.c.l.b16 %v319
    %v717 = vunpack.c.h.b16 %v319
    %v718 = vunpack.c.l.b16 %v320
    %v719 = vunpack.c.h.b16 %v320
    %v720 = vunpack.c.l.b16 %v321
    %v721 = vunpack.c.h.b16 %v321
    %v722 = vunpack.c.l.b16 %v322
    %v723 = vunpack.c.h.b16 %v322
    %v724 = vunpack.c.l.b16 %v323
    %v725 = vunpack.c.h.b16 %v323
    %v726 = vunpack.c.l.b16 %v324
    %v727 = vunpack.c.h.b16 %v324
    %v728 = vunpack.c.l.b16 %v325
    %v729 = vunpack.c.h.b16 %v325
    %v730 = vunpack.c.l.b16 %v326
    %v731 = vunpack.c.h.b16 %v326
    %v732 = vunpack.c.l.b16 %v327
    %v733 = vunpack.c.h.b16 %v327
    %v734 = vpack.c.b16 %v482, %v478
    %v735 = vpack.c.b16 %v483, %v479
    %v736 = vpack.c.b16 %v484, %v480
    %v737 = vpack.c.b16 %v485, %v481
    %v738 = vpack.c.b16 %v490, %v486
    %v739 = vpack.c.b16 %v491, %v487
    %v740 = vpack.c.b16 %v492, %v488
    %v741 = vpack.c.b16 %v493, %v489
    %v742 = vpack.c.b16 %v498, %v494
    %v743 = vpack.c.b16 %v499, %v495
    %v744 = vpack.c.b16 %v500, %v496
    %v745 = vpack.c.b16 %v501, %v497
    %v746 = vpack.c.b16 %v506, %v502
    %v747 = vpack.c.b16 %v507, %v503
    %v748 = vpack.c.b16 %v508, %v504
    %v749 = vpack.c.b16 %v509, %v505
    %v750 = vpack.c.b16 %v514, %v510
    %v751 = vpack.c.b16 %v515, %v511
    %v752 = vpack.c.b16 %v516, %v512
    %v753 = vpack.c.b16 %v517, %v513
    %v754 = vpack.c.b16 %v522, %v518
    %v755 = vpack.c.b16 %v523, %v519
    %v756 = vpack.c.b16 %v524, %v520
    %v757 = vpack.c.b16 %v525, %v521
    %v758 = vpack.c.b16 %v530, %v526
    %v759 = vpack.c.b16 %v531, %v527
    %v760 = vpack.c.b16 %v532, %v528
    %v761 = vpack.c.b16 %v533, %v529
    %v762 = vpack.c.b16 %v538, %v534
    %v763 = vpack.c.b16 %v539, %v535
    %v764 = vpack.c.b16 %v540, %v536
    %v765 = vpack.c.b16 %v541, %v537
    %v766 = vpack.c.b16 %v546, %v542
    %v767 = vpack.c.b16 %v547, %v543
    %v768 = vpack.c.b16 %v548, %v544
    %v769 = vpack.c.b16 %v549, %v545
    %v770 = vpack.c.b16 %v554, %v550
    %v771 = vpack.c.b16 %v555, %v551
    %v772 = vpack.c.b16 %v556, %v552
    %v773 = vpack.c.b16 %v557, %v553
    %v774 = vpack.c.b16 %v562, %v558
    %v775 = vpack.c.b16 %v563, %v559
    %v776 = vpack.c.b16 %v564, %v560
    %v777 = vpack.c.b16 %v565, %v561
    %v778 = vpack.c.b16 %v570, %v566
    %v779 = vpack.c.b16 %v571, %v567
    %v780 = vpack.c.b16 %v572, %v568
    %v781 = vpack.c.b16 %v573, %v569
    %v782 = vpack.c.b16 %v578, %v574
    %v783 = vpack.c.b16 %v579, %v575
    %v784 = vpack.c.b16 %v580, %v576
    %v785 = vpack.c.b16 %v581, %v577
    %v786 = vpack.c.b16 %v586, %v582
    %v787 = vpack.c.b16 %v587, %v583
    %v788 = vpack.c.b16 %v588, %v584
    %v789 = vpack.c.b16 %v589, %v585
    %v790 = vpack.c.b16 %v594, %v590
    %v791 = vpack.c.b16 %v595, %v591
    %v792 = vpack.c.b16 %v596, %v592
    %v793 = vpack.c.b16 %v597, %v593
    %v794 = vpack.c.b16 %v602, %v598
    %v795 = vpack.c.b16 %v603, %v599
    %v796 = vpack.c.b16 %v604, %v600
    %v797 = vpack.c.b16 %v605, %v601
    %v798 = vpack.c.b16 %v610, %v606
    %v799 = vpack.c.b16 %v611, %v607
    %v800 = vpack.c.b16 %v612, %v608
    %v801 = vpack.c.b16 %v613, %v609
    %v802 = vpack.c.b16 %v618, %v614
    %v803 = vpack.c.b16 %v619, %v615
    %v804 = vpack.c.b16 %v620, %v616
    %v805 = vpack.c.b16 %v621, %v617
    %v806 = vpack.c.b16 %v626, %v622
    %v807 = vpack.c.b16 %v627, %v623
    %v808 = vpack.c.b16 %v628, %v624
    %v809 = vpack.c.b16 %v629, %v625
    %v810 = vpack.c.b16 %v634, %v630
    %v811 = vpack.c.b16 %v635, %v631
    %v812 = vpack.c.b16 %v636, %v632
    %v813 = vpack.c.b16 %v637, %v633
    %v814 = vpack.c.b16 %v642, %v638
    %v815 = vpack.c.b16 %v643, %v639
    %v816 = vpack.c.b16 %v644, %v640
    %v817 = vpack.c.b16 %v645, %v641
    %v818 = vpack.c.b16 %v650, %v646
    %v819 = vpack.c.b16 %v651, %v647
    %v820 = vpack.c.b16 %v652, %v648
    %v821 = vpack.c.b16 %v653, %v649
    %v822 = vpack.c.b16 %v658, %v654
    %v823 = vpack.c.b16 %v659, %v655
    %v824 = vpack.c.b16 %v660, %v656
    %v825 = vpack.c.b16 %v661, %v657
    %v826 = vpack.c.b16 %v666, %v662
    %v827 = vpack.c.b16 %v667, %v663
    %v828 = vpack.c.b16 %v668, %v664
    %v829 = vpack.c.b16 %v669, %v665
    %v830 = vpack.c.b16 %v674, %v670
    %v831 = vpack.c.b16 %v675, %v671
    %v832 = vpack.c.b16 %v676, %v672
    %v833 = vpack.c.b16 %v677, %v673
    %v834 = vpack.c.b16 %v682, %v678
    %v835 = vpack.c.b16 %v683, %v679
    %v836 = vpack.c.b16 %v684, %v680
    %v837 = vpack.c.b16 %v685, %v681
    %v838 = vpack.c.b16 %v690, %v686
    %v839 = vpack.c.b16 %v691, %v687
    %v840 = vpack.c.b16 %v692, %v688
    %v841 = vpack.c.b16 %v693, %v689
    %v842 = vpack.c.b16 %v698, %v694
    %v843 = vpack.c.b16 %v699, %v695
    %v844 = vpack.c.b16 %v700, %v696
    %v845 = vpack.c.b16 %v701, %v697
    %v846 = vpack.c.b16 %v706, %v702
    %v847 = vpack.c.b16 %v707, %v703
    %v848 = vpack.c.b16 %v708, %v704
    %v849 = vpack.c.b16 %v709, %v705
    %v850 = vpack.c.b16 %v714, %v710
    %v851 = vpack.c.b16 %v715, %v711
    %v852 = vpack.c.b16 %v716, %v712
    %v853 = vpack.c.b16 %v717, %v713
    %v854 = vpack.c.b16 %v722, %v718
    %v855 = vpack.c.b16 %v723, %v719
    %v856 = vpack.c.b16 %v724, %v720
    %v857 = vpack.c.b16 %v725, %v721
    %v858 = vpack.c.b16 %v730, %v726
    %v859 = vpack.c.b16 %v731, %v727
    %v860 = vpack.c.b16 %v732, %v728
    %v861 = vpack.c.b16 %v733, %v729
    %990 = vmatprep.subr.bf16.mxu0 %v735
    %991 = vmatpush1.bf16.msra.mxu0 %v734
    %992 = vmatprep.subr.bf16.mxu0 %v739
    %993 = vmatpush1.bf16.msra.mxu0 %v738
    %994 = vmatprep.subr.bf16.mxu0 %v743
    %995 = vmatpush1.bf16.msra.mxu0 %v742
    %996 = vmatprep.subr.bf16.mxu0 %v747
    %997 = vmatpush1.bf16.msra.mxu0 %v746
    %998 = vmatprep.subr.bf16.mxu0 %v751
    %999 = vmatpush1.bf16.msra.mxu0 %v750
    %1000 = vmatprep.subr.bf16.mxu0 %v755
    %1001 = vmatpush1.bf16.msra.mxu0 %v754
    %1002 = vmatprep.subr.bf16.mxu0 %v759
    %1003 = vmatpush1.bf16.msra.mxu0 %v758
    %1004 = vmatprep.subr.bf16.mxu0 %v763
    %1005 = vmatpush1.bf16.msra.mxu0 %v762
    %1006 = vmatprep.subr.bf16.mxu0 %v767
    %1007 = vmatpush1.bf16.msra.mxu0 %v766
    %1008 = vmatprep.subr.bf16.mxu0 %v771
    %1009 = vmatpush1.bf16.msra.mxu0 %v770
    %1010 = vmatprep.subr.bf16.mxu0 %v775
    %1011 = vmatpush1.bf16.msra.mxu0 %v774
    %1012 = vmatprep.subr.bf16.mxu0 %v779
    %1013 = vmatpush1.bf16.msra.mxu0 %v778
    %1014 = vmatprep.subr.bf16.mxu0 %v783
    %1015 = vmatpush1.bf16.msra.mxu0 %v782
    %1016 = vmatprep.subr.bf16.mxu0 %v787
    %1017 = vmatpush1.bf16.msra.mxu0 %v786
    %1018 = vmatprep.subr.bf16.mxu0 %v791
    %1019 = vmatpush1.bf16.msra.mxu0 %v790
    %1020 = vmatprep.subr.bf16.mxu0 %v795
    %1021 = vmatpush1.bf16.msra.mxu0 %v794
    %1022 = vmatprep.mubr.bf16.mxu0 %v197
    %1023 = vmatmul.mubr.bf16.gmra.mrb[0].mxu0 %v196
    %v1024 = vpop.f32.mrb[0].mxu0
    %v1025 = vadd.f32 %v333, %v1024
    %v1026 = vpop.f32.mrb[0].mxu0
    %v1027 = vadd.f32 %v337, %v1026
    %v1028 = vpop.f32.mrb[0].mxu0
    %v1029 = vpop.f32.mrb[0].mxu0
    %1030 = vdwg.mxu0
    %1031 = vmatprep.subr.bf16.mxu0 %v799
    %1032 = vmatpush1.bf16.msra.mxu0 %v798
    %1033 = vmatprep.subr.bf16.mxu0 %v803
    %1034 = vmatpush1.bf16.msra.mxu0 %v802
    %1035 = vmatprep.subr.bf16.mxu0 %v807
    %1036 = vmatpush1.bf16.msra.mxu0 %v806
    %1037 = vmatprep.subr.bf16.mxu0 %v811
    %1038 = vmatpush1.bf16.msra.mxu0 %v810
    %1039 = vmatprep.subr.bf16.mxu0 %v815
    %1040 = vmatpush1.bf16.msra.mxu0 %v814
    %1041 = vmatprep.subr.bf16.mxu0 %v819
    %1042 = vmatpush1.bf16.msra.mxu0 %v818
    %1043 = vmatprep.subr.bf16.mxu0 %v823
    %1044 = vmatpush1.bf16.msra.mxu0 %v822
    %1045 = vmatprep.subr.bf16.mxu0 %v827
    %1046 = vmatpush1.bf16.msra.mxu0 %v826
    %1047 = vmatprep.subr.bf16.mxu0 %v831
    %1048 = vmatpush1.bf16.msra.mxu0 %v830
    %1049 = vmatprep.subr.bf16.mxu0 %v835
    %1050 = vmatpush1.bf16.msra.mxu0 %v834
    %1051 = vmatprep.subr.bf16.mxu0 %v839
    %1052 = vmatpush1.bf16.msra.mxu0 %v838
    %1053 = vmatprep.subr.bf16.mxu0 %v843
    %1054 = vmatpush1.bf16.msra.mxu0 %v842
    %1055 = vmatprep.subr.bf16.mxu0 %v847
    %1056 = vmatpush1.bf16.msra.mxu0 %v846
    %1057 = vmatprep.subr.bf16.mxu0 %v851
    %1058 = vmatpush1.bf16.msra.mxu0 %v850
    %1059 = vmatprep.subr.bf16.mxu0 %v855
    %1060 = vmatpush1.bf16.msra.mxu0 %v854
    %1061 = vmatprep.subr.bf16.mxu0 %v859
    %1062 = vmatpush1.bf16.msra.mxu0 %v858
    %1063 = vmatprep.mubr.bf16.mxu0 %v199
    %1064 = vmatmul.mubr.bf16.gmra.mrb[0].mxu0 %v198
    %v1065 = vpop.f32.mrb[0].mxu0
    %v1066 = vadd.f32 %v1025, %v1065
    %v1067 = vpop.f32.mrb[0].mxu0
    %v1068 = vadd.f32 %v1027, %v1067
    %v1069 = vpop.f32.mrb[0].mxu0
    %v1070 = vpop.f32.mrb[0].mxu0
    %1071 = vdwg.mxu0
    %1072 = vmatprep.subr.bf16.mxu0 %v737
    %1073 = vmatpush1.bf16.msra.mxu0 %v736
    %1074 = vmatprep.subr.bf16.mxu0 %v741
    %1075 = vmatpush1.bf16.msra.mxu0 %v740
    %1076 = vmatprep.subr.bf16.mxu0 %v745
    %1077 = vmatpush1.bf16.msra.mxu0 %v744
    %1078 = vmatprep.subr.bf16.mxu0 %v749
    %1079 = vmatpush1.bf16.msra.mxu0 %v748
    %1080 = vmatprep.subr.bf16.mxu0 %v753
    %1081 = vmatpush1.bf16.msra.mxu0 %v752
    %1082 = vmatprep.subr.bf16.mxu0 %v757
    %1083 = vmatpush1.bf16.msra.mxu0 %v756
    %1084 = vmatprep.subr.bf16.mxu0 %v761
    %1085 = vmatpush1.bf16.msra.mxu0 %v760
    %1086 = vmatprep.subr.bf16.mxu0 %v765
    %1087 = vmatpush1.bf16.msra.mxu0 %v764
    %1088 = vmatprep.subr.bf16.mxu0 %v769
    %1089 = vmatpush1.bf16.msra.mxu0 %v768
    %1090 = vmatprep.subr.bf16.mxu0 %v773
    %1091 = vmatpush1.bf16.msra.mxu0 %v772
    %1092 = vmatprep.subr.bf16.mxu0 %v777
    %1093 = vmatpush1.bf16.msra.mxu0 %v776
    %1094 = vmatprep.subr.bf16.mxu0 %v781
    %1095 = vmatpush1.bf16.msra.mxu0 %v780
    %1096 = vmatprep.subr.bf16.mxu0 %v785
    %1097 = vmatpush1.bf16.msra.mxu0 %v784
    %1098 = vmatprep.subr.bf16.mxu0 %v789
    %1099 = vmatpush1.bf16.msra.mxu0 %v788
    %1100 = vmatprep.subr.bf16.mxu0 %v793
    %1101 = vmatpush1.bf16.msra.mxu0 %v792
    %1102 = vmatprep.subr.bf16.mxu0 %v797
    %1103 = vmatpush1.bf16.msra.mxu0 %v796
    %1104 = vmatprep.mubr.bf16.mxu0 %v197
    %1105 = vmatmul.mubr.bf16.gmra.mrb[0].mxu0 %v196
    %v1106 = vpop.f32.mrb[0].mxu0
    %v1107 = vadd.f32 %v341, %v1106
    %v1108 = vpop.f32.mrb[0].mxu0
    %v1109 = vadd.f32 %v345, %v1108
    %v1110 = vpop.f32.mrb[0].mxu0
    %v1111 = vpop.f32.mrb[0].mxu0
    %1112 = vdwg.mxu0
    %1113 = vmatprep.subr.bf16.mxu0 %v801
    %1114 = vmatpush1.bf16.msra.mxu0 %v800
    %1115 = vmatprep.subr.bf16.mxu0 %v805
    %1116 = vmatpush1.bf16.msra.mxu0 %v804
    %1117 = vmatprep.subr.bf16.mxu0 %v809
    %1118 = vmatpush1.bf16.msra.mxu0 %v808
    %1119 = vmatprep.subr.bf16.mxu0 %v813
    %1120 = vmatpush1.bf16.msra.mxu0 %v812
    %1121 = vmatprep.subr.bf16.mxu0 %v817
    %1122 = vmatpush1.bf16.msra.mxu0 %v816
    %1123 = vmatprep.subr.bf16.mxu0 %v821
    %1124 = vmatpush1.bf16.msra.mxu0 %v820
    %1125 = vmatprep.subr.bf16.mxu0 %v825
    %1126 = vmatpush1.bf16.msra.mxu0 %v824
    %1127 = vmatprep.subr.bf16.mxu0 %v829
    %1128 = vmatpush1.bf16.msra.mxu0 %v828
    %1129 = vmatprep.subr.bf16.mxu0 %v833
    %1130 = vmatpush1.bf16.msra.mxu0 %v832
    %1131 = vmatprep.subr.bf16.mxu0 %v837
    %1132 = vmatpush1.bf16.msra.mxu0 %v836
    %1133 = vmatprep.subr.bf16.mxu0 %v841
    %1134 = vmatpush1.bf16.msra.mxu0 %v840
    %1135 = vmatprep.subr.bf16.mxu0 %v845
    %1136 = vmatpush1.bf16.msra.mxu0 %v844
    %1137 = vmatprep.subr.bf16.mxu0 %v849
    %1138 = vmatpush1.bf16.msra.mxu0 %v848
    %1139 = vmatprep.subr.bf16.mxu0 %v853
    %1140 = vmatpush1.bf16.msra.mxu0 %v852
    %1141 = vmatprep.subr.bf16.mxu0 %v857
    %1142 = vmatpush1.bf16.msra.mxu0 %v856
    %1143 = vmatprep.subr.bf16.mxu0 %v861
    %1144 = vmatpush1.bf16.msra.mxu0 %v860
    %1145 = vmatprep.mubr.bf16.mxu0 %v199
    %1146 = vmatmul.mubr.bf16.gmra.mrb[0].mxu0 %v198
    %v1147 = vpop.f32.mrb[0].mxu0
    %v1148 = vadd.f32 %v1107, %v1147
    %v1149 = vpop.f32.mrb[0].mxu0
    %v1150 = vadd.f32 %v1109, %v1149
    %v1151 = vpop.f32.mrb[0].mxu0
    %v1152 = vpop.f32.mrb[0].mxu0
    %1153 = vdwg.mxu0
    %v1154 = vtanh.pop %v1066
    %v1155 = vtanh.pop %v1068
    %v1156 = vtanh.pop %v1148
    %v1157 = vtanh.pop %v1150
    %v1158 = vpack.c.bf16 %v1154, %v1154
    %v1159 = vpack.c.bf16 %v1155, %v1155
    %v1160 = vpack.c.bf16 %v1156, %v1156
    %v1161 = vpack.c.bf16 %v1157, %v1157
    %v1162 = vld [vmem:[%s5] sm:$0xff]
    %v1163 = vld [vmem:[%s5 + $0x8] sm:$0xff]
    %v1164 = vld [vmem:[%s5 + $0x10] sm:$0xff]
    %v1165 = vld [vmem:[%s5 + $0x18] sm:$0xff]
    %v1166 = vld [vmem:[%s5 + $0x20] sm:$0xff]
    %v1167 = vld [vmem:[%s5 + $0x28] sm:$0xff]
    %v1168 = vld [vmem:[%s5 + $0x30] sm:$0xff]
    %v1169 = vld [vmem:[%s5 + $0x38] sm:$0xff]
    %v1170 = vld [vmem:[%s5 + $0x40] sm:$0xff]
    %v1171 = vld [vmem:[%s5 + $0x48] sm:$0xff]
    %v1172 = vld [vmem:[%s5 + $0x50] sm:$0xff]
    %v1173 = vld [vmem:[%s5 + $0x58] sm:$0xff]
    %v1174 = vld [vmem:[%s5 + $0x60] sm:$0xff]
    %v1175 = vld [vmem:[%s5 + $0x68] sm:$0xff]
    %v1176 = vld [vmem:[%s5 + $0x70] sm:$0xff]
    %v1177 = vld [vmem:[%s5 + $0x78] sm:$0xff]
    %v1178 = vld [vmem:[%s5 + $0x80] sm:$0xff]
    %v1179 = vld [vmem:[%s5 + $0x88] sm:$0xff]
    %v1180 = vld [vmem:[%s5 + $0x90] sm:$0xff]
    %v1181 = vld [vmem:[%s5 + $0x98] sm:$0xff]
    %v1182 = vld [vmem:[%s5 + $0xa0] sm:$0xff]
    %v1183 = vld [vmem:[%s5 + $0xa8] sm:$0xff]
    %v1184 = vld [vmem:[%s5 + $0xb0] sm:$0xff]
    %v1185 = vld [vmem:[%s5 + $0xb8] sm:$0xff]
    %v1186 = vld [vmem:[%s5 + $0xc0] sm:$0xff]
    %v1187 = vld [vmem:[%s5 + $0xc8] sm:$0xff]
    %v1188 = vld [vmem:[%s5 + $0xd0] sm:$0xff]
    %v1189 = vld [vmem:[%s5 + $0xd8] sm:$0xff]
    %v1190 = vld [vmem:[%s5 + $0xe0] sm:$0xff]
    %v1191 = vld [vmem:[%s5 + $0xe8] sm:$0xff]
    %v1192 = vld [vmem:[%s5 + $0xf0] sm:$0xff]
    %v1193 = vld [vmem:[%s5 + $0xf8] sm:$0xff]
    %v1194 = vld [vmem:[%s5 + $0x100] sm:$0xff]
    %v1195 = vld [vmem:[%s5 + $0x108] sm:$0xff]
    %v1196 = vld [vmem:[%s5 + $0x110] sm:$0xff]
    %v1197 = vld [vmem:[%s5 + $0x118] sm:$0xff]
    %v1198 = vld [vmem:[%s5 + $0x120] sm:$0xff]
    %v1199 = vld [vmem:[%s5 + $0x128] sm:$0xff]
    %v1200 = vld [vmem:[%s5 + $0x130] sm:$0xff]
    %v1201 = vld [vmem:[%s5 + $0x138] sm:$0xff]
    %v1202 = vld [vmem:[%s5 + $0x140] sm:$0xff]
    %v1203 = vld [vmem:[%s5 + $0x148] sm:$0xff]
    %v1204 = vld [vmem:[%s5 + $0x150] sm:$0xff]
    %v1205 = vld [vmem:[%s5 + $0x158] sm:$0xff]
    %v1206 = vld [vmem:[%s5 + $0x160] sm:$0xff]
    %v1207 = vld [vmem:[%s5 + $0x168] sm:$0xff]
    %v1208 = vld [vmem:[%s5 + $0x170] sm:$0xff]
    %v1209 = vld [vmem:[%s5 + $0x178] sm:$0xff]
    %v1210 = vld [vmem:[%s5 + $0x180] sm:$0xff]
    %v1211 = vld [vmem:[%s5 + $0x188] sm:$0xff]
    %v1212 = vld [vmem:[%s5 + $0x190] sm:$0xff]
    %v1213 = vld [vmem:[%s5 + $0x198] sm:$0xff]
    %v1214 = vld [vmem:[%s5 + $0x1a0] sm:$0xff]
    %v1215 = vld [vmem:[%s5 + $0x1a8] sm:$0xff]
    %v1216 = vld [vmem:[%s5 + $0x1b0] sm:$0xff]
    %v1217 = vld [vmem:[%s5 + $0x1b8] sm:$0xff]
    %v1218 = vld [vmem:[%s5 + $0x1c0] sm:$0xff]
    %v1219 = vld [vmem:[%s5 + $0x1c8] sm:$0xff]
    %v1220 = vld [vmem:[%s5 + $0x1d0] sm:$0xff]
    %v1221 = vld [vmem:[%s5 + $0x1d8] sm:$0xff]
    %v1222 = vld [vmem:[%s5 + $0x1e0] sm:$0xff]
    %v1223 = vld [vmem:[%s5 + $0x1e8] sm:$0xff]
    %v1224 = vld [vmem:[%s5 + $0x1f0] sm:$0xff]
    %v1225 = vld [vmem:[%s5 + $0x1f8] sm:$0xff]
    %v1226 = vld [vmem:[%s5 + $0x200] sm:$0xff]
    %v1227 = vld [vmem:[%s5 + $0x208] sm:$0xff]
    %v1228 = vld [vmem:[%s5 + $0x210] sm:$0xff]
    %v1229 = vld [vmem:[%s5 + $0x218] sm:$0xff]
    %v1230 = vld [vmem:[%s5 + $0x220] sm:$0xff]
    %v1231 = vld [vmem:[%s5 + $0x228] sm:$0xff]
    %v1232 = vld [vmem:[%s5 + $0x230] sm:$0xff]
    %v1233 = vld [vmem:[%s5 + $0x238] sm:$0xff]
    %v1234 = vld [vmem:[%s5 + $0x240] sm:$0xff]
    %v1235 = vld [vmem:[%s5 + $0x248] sm:$0xff]
    %v1236 = vld [vmem:[%s5 + $0x250] sm:$0xff]
    %v1237 = vld [vmem:[%s5 + $0x258] sm:$0xff]
    %v1238 = vld [vmem:[%s5 + $0x260] sm:$0xff]
    %v1239 = vld [vmem:[%s5 + $0x268] sm:$0xff]
    %v1240 = vld [vmem:[%s5 + $0x270] sm:$0xff]
    %v1241 = vld [vmem:[%s5 + $0x278] sm:$0xff]
    %v1242 = vld [vmem:[%s5 + $0x280] sm:$0xff]
    %v1243 = vld [vmem:[%s5 + $0x288] sm:$0xff]
    %v1244 = vld [vmem:[%s5 + $0x290] sm:$0xff]
    %v1245 = vld [vmem:[%s5 + $0x298] sm:$0xff]
    %v1246 = vld [vmem:[%s5 + $0x2a0] sm:$0xff]
    %v1247 = vld [vmem:[%s5 + $0x2a8] sm:$0xff]
    %v1248 = vld [vmem:[%s5 + $0x2b0] sm:$0xff]
    %v1249 = vld [vmem:[%s5 + $0x2b8] sm:$0xff]
    %v1250 = vld [vmem:[%s5 + $0x2c0] sm:$0xff]
    %v1251 = vld [vmem:[%s5 + $0x2c8] sm:$0xff]
    %v1252 = vld [vmem:[%s5 + $0x2d0] sm:$0xff]
    %v1253 = vld [vmem:[%s5 + $0x2d8] sm:$0xff]
    %v1254 = vld [vmem:[%s5 + $0x2e0] sm:$0xff]
    %v1255 = vld [vmem:[%s5 + $0x2e8] sm:$0xff]
    %v1256 = vld [vmem:[%s5 + $0x2f0] sm:$0xff]
    %v1257 = vld [vmem:[%s5 + $0x2f8] sm:$0xff]
    %v1258 = vld [vmem:[%s5 + $0x300] sm:$0xff]
    %v1259 = vld [vmem:[%s5 + $0x308] sm:$0xff]
    %v1260 = vld [vmem:[%s5 + $0x310] sm:$0xff]
    %v1261 = vld [vmem:[%s5 + $0x318] sm:$0xff]
    %v1262 = vld [vmem:[%s5 + $0x320] sm:$0xff]
    %v1263 = vld [vmem:[%s5 + $0x328] sm:$0xff]
    %v1264 = vld [vmem:[%s5 + $0x330] sm:$0xff]
    %v1265 = vld [vmem:[%s5 + $0x338] sm:$0xff]
    %v1266 = vld [vmem:[%s5 + $0x340] sm:$0xff]
    %v1267 = vld [vmem:[%s5 + $0x348] sm:$0xff]
    %v1268 = vld [vmem:[%s5 + $0x350] sm:$0xff]
    %v1269 = vld [vmem:[%s5 + $0x358] sm:$0xff]
    %v1270 = vld [vmem:[%s5 + $0x360] sm:$0xff]
    %v1271 = vld [vmem:[%s5 + $0x368] sm:$0xff]
    %v1272 = vld [vmem:[%s5 + $0x370] sm:$0xff]
    %v1273 = vld [vmem:[%s5 + $0x378] sm:$0xff]
    %v1274 = vld [vmem:[%s5 + $0x380] sm:$0xff]
    %v1275 = vld [vmem:[%s5 + $0x388] sm:$0xff]
    %v1276 = vld [vmem:[%s5 + $0x390] sm:$0xff]
    %v1277 = vld [vmem:[%s5 + $0x398] sm:$0xff]
    %v1278 = vld [vmem:[%s5 + $0x3a0] sm:$0xff]
    %v1279 = vld [vmem:[%s5 + $0x3a8] sm:$0xff]
    %v1280 = vld [vmem:[%s5 + $0x3b0] sm:$0xff]
    %v1281 = vld [vmem:[%s5 + $0x3b8] sm:$0xff]
    %v1282 = vld [vmem:[%s5 + $0x3c0] sm:$0xff]
    %v1283 = vld [vmem:[%s5 + $0x3c8] sm:$0xff]
    %v1284 = vld [vmem:[%s5 + $0x3d0] sm:$0xff]
    %v1285 = vld [vmem:[%s5 + $0x3d8] sm:$0xff]
    %v1286 = vld [vmem:[%s5 + $0x3e0] sm:$0xff]
    %v1287 = vld [vmem:[%s5 + $0x3e8] sm:$0xff]
    %v1288 = vld [vmem:[%s5 + $0x3f0] sm:$0xff]
    %v1289 = vld [vmem:[%s5 + $0x3f8] sm:$0xff]
    %v1290 = vld [vmem:[%s6] sm:$0xf]
    %v1292 = vlaneseq
    %v1293 = vshrl.u32 %v1292, 7
    %v1294 = vsub.s32 0, %v1293
    %v1295 = vrot.slane %v1290, %v1294
    %v1296 = vlaneseq
    %v1297 = vshrl.u32 %v1296, 7
    %v1298 = vsub.s32 1, %v1297
    %v1299 = vrot.slane %v1290, %v1298
    %v1300 = vlaneseq
    %v1301 = vshrl.u32 %v1300, 7
    %v1302 = vsub.s32 2, %v1301
    %v1303 = vrot.slane %v1290, %v1302
    %v1304 = vlaneseq
    %v1305 = vshrl.u32 %v1304, 7
    %v1306 = vsub.s32 3, %v1305
    %v1307 = vrot.slane %v1290, %v1306
    %v1440 = vunpack.c.l.b16 %v1162
    %v1441 = vunpack.c.h.b16 %v1162
    %v1442 = vunpack.c.l.b16 %v1163
    %v1443 = vunpack.c.h.b16 %v1163
    %v1444 = vunpack.c.l.b16 %v1164
    %v1445 = vunpack.c.h.b16 %v1164
    %v1446 = vunpack.c.l.b16 %v1165
    %v1447 = vunpack.c.h.b16 %v1165
    %v1448 = vunpack.c.l.b16 %v1166
    %v1449 = vunpack.c.h.b16 %v1166
    %v1450 = vunpack.c.l.b16 %v1167
    %v1451 = vunpack.c.h.b16 %v1167
    %v1452 = vunpack.c.l.b16 %v1168
    %v1453 = vunpack.c.h.b16 %v1168
    %v1454 = vunpack.c.l.b16 %v1169
    %v1455 = vunpack.c.h.b16 %v1169
    %v1456 = vunpack.c.l.b16 %v1170
    %v1457 = vunpack.c.h.b16 %v1170
    %v1458 = vunpack.c.l.b16 %v1171
    %v1459 = vunpack.c.h.b16 %v1171
    %v1460 = vunpack.c.l.b16 %v1172
    %v1461 = vunpack.c.h.b16 %v1172
    %v1462 = vunpack.c.l.b16 %v1173
    %v1463 = vunpack.c.h.b16 %v1173
    %v1464 = vunpack.c.l.b16 %v1174
    %v1465 = vunpack.c.h.b16 %v1174
    %v1466 = vunpack.c.l.b16 %v1175
    %v1467 = vunpack.c.h.b16 %v1175
    %v1468 = vunpack.c.l.b16 %v1176
    %v1469 = vunpack.c.h.b16 %v1176
    %v1470 = vunpack.c.l.b16 %v1177
    %v1471 = vunpack.c.h.b16 %v1177
    %v1472 = vunpack.c.l.b16 %v1178
    %v1473 = vunpack.c.h.b16 %v1178
    %v1474 = vunpack.c.l.b16 %v1179
    %v1475 = vunpack.c.h.b16 %v1179
    %v1476 = vunpack.c.l.b16 %v1180
    %v1477 = vunpack.c.h.b16 %v1180
    %v1478 = vunpack.c.l.b16 %v1181
    %v1479 = vunpack.c.h.b16 %v1181
    %v1480 = vunpack.c.l.b16 %v1182
    %v1481 = vunpack.c.h.b16 %v1182
    %v1482 = vunpack.c.l.b16 %v1183
    %v1483 = vunpack.c.h.b16 %v1183
    %v1484 = vunpack.c.l.b16 %v1184
    %v1485 = vunpack.c.h.b16 %v1184
    %v1486 = vunpack.c.l.b16 %v1185
    %v1487 = vunpack.c.h.b16 %v1185
    %v1488 = vunpack.c.l.b16 %v1186
    %v1489 = vunpack.c.h.b16 %v1186
    %v1490 = vunpack.c.l.b16 %v1187
    %v1491 = vunpack.c.h.b16 %v1187
    %v1492 = vunpack.c.l.b16 %v1188
    %v1493 = vunpack.c.h.b16 %v1188
    %v1494 = vunpack.c.l.b16 %v1189
    %v1495 = vunpack.c.h.b16 %v1189
    %v1496 = vunpack.c.l.b16 %v1190
    %v1497 = vunpack.c.h.b16 %v1190
    %v1498 = vunpack.c.l.b16 %v1191
    %v1499 = vunpack.c.h.b16 %v1191
    %v1500 = vunpack.c.l.b16 %v1192
    %v1501 = vunpack.c.h.b16 %v1192
    %v1502 = vunpack.c.l.b16 %v1193
    %v1503 = vunpack.c.h.b16 %v1193
    %v1504 = vunpack.c.l.b16 %v1194
    %v1505 = vunpack.c.h.b16 %v1194
    %v1506 = vunpack.c.l.b16 %v1195
    %v1507 = vunpack.c.h.b16 %v1195
    %v1508 = vunpack.c.l.b16 %v1196
    %v1509 = vunpack.c.h.b16 %v1196
    %v1510 = vunpack.c.l.b16 %v1197
    %v1511 = vunpack.c.h.b16 %v1197
    %v1512 = vunpack.c.l.b16 %v1198
    %v1513 = vunpack.c.h.b16 %v1198
    %v1514 = vunpack.c.l.b16 %v1199
    %v1515 = vunpack.c.h.b16 %v1199
    %v1516 = vunpack.c.l.b16 %v1200
    %v1517 = vunpack.c.h.b16 %v1200
    %v1518 = vunpack.c.l.b16 %v1201
    %v1519 = vunpack.c.h.b16 %v1201
    %v1520 = vunpack.c.l.b16 %v1202
    %v1521 = vunpack.c.h.b16 %v1202
    %v1522 = vunpack.c.l.b16 %v1203
    %v1523 = vunpack.c.h.b16 %v1203
    %v1524 = vunpack.c.l.b16 %v1204
    %v1525 = vunpack.c.h.b16 %v1204
    %v1526 = vunpack.c.l.b16 %v1205
    %v1527 = vunpack.c.h.b16 %v1205
    %v1528 = vunpack.c.l.b16 %v1206
    %v1529 = vunpack.c.h.b16 %v1206
    %v1530 = vunpack.c.l.b16 %v1207
    %v1531 = vunpack.c.h.b16 %v1207
    %v1532 = vunpack.c.l.b16 %v1208
    %v1533 = vunpack.c.h.b16 %v1208
    %v1534 = vunpack.c.l.b16 %v1209
    %v1535 = vunpack.c.h.b16 %v1209
    %v1536 = vunpack.c.l.b16 %v1210
    %v1537 = vunpack.c.h.b16 %v1210
    %v1538 = vunpack.c.l.b16 %v1211
    %v1539 = vunpack.c.h.b16 %v1211
    %v1540 = vunpack.c.l.b16 %v1212
    %v1541 = vunpack.c.h.b16 %v1212
    %v1542 = vunpack.c.l.b16 %v1213
    %v1543 = vunpack.c.h.b16 %v1213
    %v1544 = vunpack.c.l.b16 %v1214
    %v1545 = vunpack.c.h.b16 %v1214
    %v1546 = vunpack.c.l.b16 %v1215
    %v1547 = vunpack.c.h.b16 %v1215
    %v1548 = vunpack.c.l.b16 %v1216
    %v1549 = vunpack.c.h.b16 %v1216
    %v1550 = vunpack.c.l.b16 %v1217
    %v1551 = vunpack.c.h.b16 %v1217
    %v1552 = vunpack.c.l.b16 %v1218
    %v1553 = vunpack.c.h.b16 %v1218
    %v1554 = vunpack.c.l.b16 %v1219
    %v1555 = vunpack.c.h.b16 %v1219
    %v1556 = vunpack.c.l.b16 %v1220
    %v1557 = vunpack.c.h.b16 %v1220
    %v1558 = vunpack.c.l.b16 %v1221
    %v1559 = vunpack.c.h.b16 %v1221
    %v1560 = vunpack.c.l.b16 %v1222
    %v1561 = vunpack.c.h.b16 %v1222
    %v1562 = vunpack.c.l.b16 %v1223
    %v1563 = vunpack.c.h.b16 %v1223
    %v1564 = vunpack.c.l.b16 %v1224
    %v1565 = vunpack.c.h.b16 %v1224
    %v1566 = vunpack.c.l.b16 %v1225
    %v1567 = vunpack.c.h.b16 %v1225
    %v1568 = vunpack.c.l.b16 %v1226
    %v1569 = vunpack.c.h.b16 %v1226
    %v1570 = vunpack.c.l.b16 %v1227
    %v1571 = vunpack.c.h.b16 %v1227
    %v1572 = vunpack.c.l.b16 %v1228
    %v1573 = vunpack.c.h.b16 %v1228
    %v1574 = vunpack.c.l.b16 %v1229
    %v1575 = vunpack.c.h.b16 %v1229
    %v1576 = vunpack.c.l.b16 %v1230
    %v1577 = vunpack.c.h.b16 %v1230
    %v1578 = vunpack.c.l.b16 %v1231
    %v1579 = vunpack.c.h.b16 %v1231
    %v1580 = vunpack.c.l.b16 %v1232
    %v1581 = vunpack.c.h.b16 %v1232
    %v1582 = vunpack.c.l.b16 %v1233
    %v1583 = vunpack.c.h.b16 %v1233
    %v1584 = vunpack.c.l.b16 %v1234
    %v1585 = vunpack.c.h.b16 %v1234
    %v1586 = vunpack.c.l.b16 %v1235
    %v1587 = vunpack.c.h.b16 %v1235
    %v1588 = vunpack.c.l.b16 %v1236
    %v1589 = vunpack.c.h.b16 %v1236
    %v1590 = vunpack.c.l.b16 %v1237
    %v1591 = vunpack.c.h.b16 %v1237
    %v1592 = vunpack.c.l.b16 %v1238
    %v1593 = vunpack.c.h.b16 %v1238
    %v1594 = vunpack.c.l.b16 %v1239
    %v1595 = vunpack.c.h.b16 %v1239
    %v1596 = vunpack.c.l.b16 %v1240
    %v1597 = vunpack.c.h.b16 %v1240
    %v1598 = vunpack.c.l.b16 %v1241
    %v1599 = vunpack.c.h.b16 %v1241
    %v1600 = vunpack.c.l.b16 %v1242
    %v1601 = vunpack.c.h.b16 %v1242
    %v1602 = vunpack.c.l.b16 %v1243
    %v1603 = vunpack.c.h.b16 %v1243
    %v1604 = vunpack.c.l.b16 %v1244
    %v1605 = vunpack.c.h.b16 %v1244
    %v1606 = vunpack.c.l.b16 %v1245
    %v1607 = vunpack.c.h.b16 %v1245
    %v1608 = vunpack.c.l.b16 %v1246
    %v1609 = vunpack.c.h.b16 %v1246
    %v1610 = vunpack.c.l.b16 %v1247
    %v1611 = vunpack.c.h.b16 %v1247
    %v1612 = vunpack.c.l.b16 %v1248
    %v1613 = vunpack.c.h.b16 %v1248
    %v1614 = vunpack.c.l.b16 %v1249
    %v1615 = vunpack.c.h.b16 %v1249
    %v1616 = vunpack.c.l.b16 %v1250
    %v1617 = vunpack.c.h.b16 %v1250
    %v1618 = vunpack.c.l.b16 %v1251
    %v1619 = vunpack.c.h.b16 %v1251
    %v1620 = vunpack.c.l.b16 %v1252
    %v1621 = vunpack.c.h.b16 %v1252
    %v1622 = vunpack.c.l.b16 %v1253
    %v1623 = vunpack.c.h.b16 %v1253
    %v1624 = vunpack.c.l.b16 %v1254
    %v1625 = vunpack.c.h.b16 %v1254
    %v1626 = vunpack.c.l.b16 %v1255
    %v1627 = vunpack.c.h.b16 %v1255
    %v1628 = vunpack.c.l.b16 %v1256
    %v1629 = vunpack.c.h.b16 %v1256
    %v1630 = vunpack.c.l.b16 %v1257
    %v1631 = vunpack.c.h.b16 %v1257
    %v1632 = vunpack.c.l.b16 %v1258
    %v1633 = vunpack.c.h.b16 %v1258
    %v1634 = vunpack.c.l.b16 %v1259
    %v1635 = vunpack.c.h.b16 %v1259
    %v1636 = vunpack.c.l.b16 %v1260
    %v1637 = vunpack.c.h.b16 %v1260
    %v1638 = vunpack.c.l.b16 %v1261
    %v1639 = vunpack.c.h.b16 %v1261
    %v1640 = vunpack.c.l.b16 %v1262
    %v1641 = vunpack.c.h.b16 %v1262
    %v1642 = vunpack.c.l.b16 %v1263
    %v1643 = vunpack.c.h.b16 %v1263
    %v1644 = vunpack.c.l.b16 %v1264
    %v1645 = vunpack.c.h.b16 %v1264
    %v1646 = vunpack.c.l.b16 %v1265
    %v1647 = vunpack.c.h.b16 %v1265
    %v1648 = vunpack.c.l.b16 %v1266
    %v1649 = vunpack.c.h.b16 %v1266
    %v1650 = vunpack.c.l.b16 %v1267
    %v1651 = vunpack.c.h.b16 %v1267
    %v1652 = vunpack.c.l.b16 %v1268
    %v1653 = vunpack.c.h.b16 %v1268
    %v1654 = vunpack.c.l.b16 %v1269
    %v1655 = vunpack.c.h.b16 %v1269
    %v1656 = vunpack.c.l.b16 %v1270
    %v1657 = vunpack.c.h.b16 %v1270
    %v1658 = vunpack.c.l.b16 %v1271
    %v1659 = vunpack.c.h.b16 %v1271
    %v1660 = vunpack.c.l.b16 %v1272
    %v1661 = vunpack.c.h.b16 %v1272
    %v1662 = vunpack.c.l.b16 %v1273
    %v1663 = vunpack.c.h.b16 %v1273
    %v1664 = vunpack.c.l.b16 %v1274
    %v1665 = vunpack.c.h.b16 %v1274
    %v1666 = vunpack.c.l.b16 %v1275
    %v1667 = vunpack.c.h.b16 %v1275
    %v1668 = vunpack.c.l.b16 %v1276
    %v1669 = vunpack.c.h.b16 %v1276
    %v1670 = vunpack.c.l.b16 %v1277
    %v1671 = vunpack.c.h.b16 %v1277
    %v1672 = vunpack.c.l.b16 %v1278
    %v1673 = vunpack.c.h.b16 %v1278
    %v1674 = vunpack.c.l.b16 %v1279
    %v1675 = vunpack.c.h.b16 %v1279
    %v1676 = vunpack.c.l.b16 %v1280
    %v1677 = vunpack.c.h.b16 %v1280
    %v1678 = vunpack.c.l.b16 %v1281
    %v1679 = vunpack.c.h.b16 %v1281
    %v1680 = vunpack.c.l.b16 %v1282
    %v1681 = vunpack.c.h.b16 %v1282
    %v1682 = vunpack.c.l.b16 %v1283
    %v1683 = vunpack.c.h.b16 %v1283
    %v1684 = vunpack.c.l.b16 %v1284
    %v1685 = vunpack.c.h.b16 %v1284
    %v1686 = vunpack.c.l.b16 %v1285
    %v1687 = vunpack.c.h.b16 %v1285
    %v1688 = vunpack.c.l.b16 %v1286
    %v1689 = vunpack.c.h.b16 %v1286
    %v1690 = vunpack.c.l.b16 %v1287
    %v1691 = vunpack.c.h.b16 %v1287
    %v1692 = vunpack.c.l.b16 %v1288
    %v1693 = vunpack.c.h.b16 %v1288
    %v1694 = vunpack.c.l.b16 %v1289
    %v1695 = vunpack.c.h.b16 %v1289
    %v1696 = vpack.c.b16 %v1444, %v1440
    %v1697 = vpack.c.b16 %v1445, %v1441
    %v1698 = vpack.c.b16 %v1446, %v1442
    %v1699 = vpack.c.b16 %v1447, %v1443
    %v1700 = vpack.c.b16 %v1452, %v1448
    %v1701 = vpack.c.b16 %v1453, %v1449
    %v1702 = vpack.c.b16 %v1454, %v1450
    %v1703 = vpack.c.b16 %v1455, %v1451
    %v1704 = vpack.c.b16 %v1460, %v1456
    %v1705 = vpack.c.b16 %v1461, %v1457
    %v1706 = vpack.c.b16 %v1462, %v1458
    %v1707 = vpack.c.b16 %v1463, %v1459
    %v1708 = vpack.c.b16 %v1468, %v1464
    %v1709 = vpack.c.b16 %v1469, %v1465
    %v1710 = vpack.c.b16 %v1470, %v1466
    %v1711 = vpack.c.b16 %v1471, %v1467
    %v1712 = vpack.c.b16 %v1476, %v1472
    %v1713 = vpack.c.b16 %v1477, %v1473
    %v1714 = vpack.c.b16 %v1478, %v1474
    %v1715 = vpack.c.b16 %v1479, %v1475
    %v1716 = vpack.c.b16 %v1484, %v1480
    %v1717 = vpack.c.b16 %v1485, %v1481
    %v1718 = vpack.c.b16 %v1486, %v1482
    %v1719 = vpack.c.b16 %v1487, %v1483
    %v1720 = vpack.c.b16 %v1492, %v1488
    %v1721 = vpack.c.b16 %v1493, %v1489
    %v1722 = vpack.c.b16 %v1494, %v1490
    %v1723 = vpack.c.b16 %v1495, %v1491
    %v1724 = vpack.c.b16 %v1500, %v1496
    %v1725 = vpack.c.b16 %v1501, %v1497
    %v1726 = vpack.c.b16 %v1502, %v1498
    %v1727 = vpack.c.b16 %v1503, %v1499
    %v1728 = vpack.c.b16 %v1508, %v1504
    %v1729 = vpack.c.b16 %v1509, %v1505
    %v1730 = vpack.c.b16 %v1510, %v1506
    %v1731 = vpack.c.b16 %v1511, %v1507
    %v1732 = vpack.c.b16 %v1516, %v1512
    %v1733 = vpack.c.b16 %v1517, %v1513
    %v1734 = vpack.c.b16 %v1518, %v1514
    %v1735 = vpack.c.b16 %v1519, %v1515
    %v1736 = vpack.c.b16 %v1524, %v1520
    %v1737 = vpack.c.b16 %v1525, %v1521
    %v1738 = vpack.c.b16 %v1526, %v1522
    %v1739 = vpack.c.b16 %v1527, %v1523
    %v1740 = vpack.c.b16 %v1532, %v1528
    %v1741 = vpack.c.b16 %v1533, %v1529
    %v1742 = vpack.c.b16 %v1534, %v1530
    %v1743 = vpack.c.b16 %v1535, %v1531
    %v1744 = vpack.c.b16 %v1540, %v1536
    %v1745 = vpack.c.b16 %v1541, %v1537
    %v1746 = vpack.c.b16 %v1542, %v1538
    %v1747 = vpack.c.b16 %v1543, %v1539
    %v1748 = vpack.c.b16 %v1548, %v1544
    %v1749 = vpack.c.b16 %v1549, %v1545
    %v1750 = vpack.c.b16 %v1550, %v1546
    %v1751 = vpack.c.b16 %v1551, %v1547
    %v1752 = vpack.c.b16 %v1556, %v1552
    %v1753 = vpack.c.b16 %v1557, %v1553
    %v1754 = vpack.c.b16 %v1558, %v1554
    %v1755 = vpack.c.b16 %v1559, %v1555
    %v1756 = vpack.c.b16 %v1564, %v1560
    %v1757 = vpack.c.b16 %v1565, %v1561
    %v1758 = vpack.c.b16 %v1566, %v1562
    %v1759 = vpack.c.b16 %v1567, %v1563
    %v1760 = vpack.c.b16 %v1572, %v1568
    %v1761 = vpack.c.b16 %v1573, %v1569
    %v1762 = vpack.c.b16 %v1574, %v1570
    %v1763 = vpack.c.b16 %v1575, %v1571
    %v1764 = vpack.c.b16 %v1580, %v1576
    %v1765 = vpack.c.b16 %v1581, %v1577
    %v1766 = vpack.c.b16 %v1582, %v1578
    %v1767 = vpack.c.b16 %v1583, %v1579
    %v1768 = vpack.c.b16 %v1588, %v1584
    %v1769 = vpack.c.b16 %v1589, %v1585
    %v1770 = vpack.c.b16 %v1590, %v1586
    %v1771 = vpack.c.b16 %v1591, %v1587
    %v1772 = vpack.c.b16 %v1596, %v1592
    %v1773 = vpack.c.b16 %v1597, %v1593
    %v1774 = vpack.c.b16 %v1598, %v1594
    %v1775 = vpack.c.b16 %v1599, %v1595
    %v1776 = vpack.c.b16 %v1604, %v1600
    %v1777 = vpack.c.b16 %v1605, %v1601
    %v1778 = vpack.c.b16 %v1606, %v1602
    %v1779 = vpack.c.b16 %v1607, %v1603
    %v1780 = vpack.c.b16 %v1612, %v1608
    %v1781 = vpack.c.b16 %v1613, %v1609
    %v1782 = vpack.c.b16 %v1614, %v1610
    %v1783 = vpack.c.b16 %v1615, %v1611
    %v1784 = vpack.c.b16 %v1620, %v1616
    %v1785 = vpack.c.b16 %v1621, %v1617
    %v1786 = vpack.c.b16 %v1622, %v1618
    %v1787 = vpack.c.b16 %v1623, %v1619
    %v1788 = vpack.c.b16 %v1628, %v1624
    %v1789 = vpack.c.b16 %v1629, %v1625
    %v1790 = vpack.c.b16 %v1630, %v1626
    %v1791 = vpack.c.b16 %v1631, %v1627
    %v1792 = vpack.c.b16 %v1636, %v1632
    %v1793 = vpack.c.b16 %v1637, %v1633
    %v1794 = vpack.c.b16 %v1638, %v1634
    %v1795 = vpack.c.b16 %v1639, %v1635
    %v1796 = vpack.c.b16 %v1644, %v1640
    %v1797 = vpack.c.b16 %v1645, %v1641
    %v1798 = vpack.c.b16 %v1646, %v1642
    %v1799 = vpack.c.b16 %v1647, %v1643
    %v1800 = vpack.c.b16 %v1652, %v1648
    %v1801 = vpack.c.b16 %v1653, %v1649
    %v1802 = vpack.c.b16 %v1654, %v1650
    %v1803 = vpack.c.b16 %v1655, %v1651
    %v1804 = vpack.c.b16 %v1660, %v1656
    %v1805 = vpack.c.b16 %v1661, %v1657
    %v1806 = vpack.c.b16 %v1662, %v1658
    %v1807 = vpack.c.b16 %v1663, %v1659
    %v1808 = vpack.c.b16 %v1668, %v1664
    %v1809 = vpack.c.b16 %v1669, %v1665
    %v1810 = vpack.c.b16 %v1670, %v1666
    %v1811 = vpack.c.b16 %v1671, %v1667
    %v1812 = vpack.c.b16 %v1676, %v1672
    %v1813 = vpack.c.b16 %v1677, %v1673
    %v1814 = vpack.c.b16 %v1678, %v1674
    %v1815 = vpack.c.b16 %v1679, %v1675
    %v1816 = vpack.c.b16 %v1684, %v1680
    %v1817 = vpack.c.b16 %v1685, %v1681
    %v1818 = vpack.c.b16 %v1686, %v1682
    %v1819 = vpack.c.b16 %v1687, %v1683
    %v1820 = vpack.c.b16 %v1692, %v1688
    %v1821 = vpack.c.b16 %v1693, %v1689
    %v1822 = vpack.c.b16 %v1694, %v1690
    %v1823 = vpack.c.b16 %v1695, %v1691
    %1952 = vmatprep.subr.bf16.mxu0 %v1697
    %1953 = vmatpush1.bf16.msra.mxu0 %v1696
    %1954 = vmatprep.subr.bf16.mxu0 %v1701
    %1955 = vmatpush1.bf16.msra.mxu0 %v1700
    %1956 = vmatprep.subr.bf16.mxu0 %v1705
    %1957 = vmatpush1.bf16.msra.mxu0 %v1704
    %1958 = vmatprep.subr.bf16.mxu0 %v1709
    %1959 = vmatpush1.bf16.msra.mxu0 %v1708
    %1960 = vmatprep.subr.bf16.mxu0 %v1713
    %1961 = vmatpush1.bf16.msra.mxu0 %v1712
    %1962 = vmatprep.subr.bf16.mxu0 %v1717
    %1963 = vmatpush1.bf16.msra.mxu0 %v1716
    %1964 = vmatprep.subr.bf16.mxu0 %v1721
    %1965 = vmatpush1.bf16.msra.mxu0 %v1720
    %1966 = vmatprep.subr.bf16.mxu0 %v1725
    %1967 = vmatpush1.bf16.msra.mxu0 %v1724
    %1968 = vmatprep.subr.bf16.mxu0 %v1729
    %1969 = vmatpush1.bf16.msra.mxu0 %v1728
    %1970 = vmatprep.subr.bf16.mxu0 %v1733
    %1971 = vmatpush1.bf16.msra.mxu0 %v1732
    %1972 = vmatprep.subr.bf16.mxu0 %v1737
    %1973 = vmatpush1.bf16.msra.mxu0 %v1736
    %1974 = vmatprep.subr.bf16.mxu0 %v1741
    %1975 = vmatpush1.bf16.msra.mxu0 %v1740
    %1976 = vmatprep.subr.bf16.mxu0 %v1745
    %1977 = vmatpush1.bf16.msra.mxu0 %v1744
    %1978 = vmatprep.subr.bf16.mxu0 %v1749
    %1979 = vmatpush1.bf16.msra.mxu0 %v1748
    %1980 = vmatprep.subr.bf16.mxu0 %v1753
    %1981 = vmatpush1.bf16.msra.mxu0 %v1752
    %1982 = vmatprep.subr.bf16.mxu0 %v1757
    %1983 = vmatpush1.bf16.msra.mxu0 %v1756
    %1984 = vmatprep.mubr.bf16.mxu0 %v1159
    %1985 = vmatmul.mubr.bf16.gmra.mrb[0].mxu0 %v1158
    %v1986 = vpop.f32.mrb[0].mxu0
    %v1987 = vadd.f32 %v1295, %v1986
    %v1988 = vpop.f32.mrb[0].mxu0
    %v1989 = vadd.f32 %v1299, %v1988
    %v1990 = vpop.f32.mrb[0].mxu0
    %v1991 = vpop.f32.mrb[0].mxu0
    %1992 = vdwg.mxu0
    %1993 = vmatprep.subr.bf16.mxu0 %v1761
    %1994 = vmatpush1.bf16.msra.mxu0 %v1760
    %1995 = vmatprep.subr.bf16.mxu0 %v1765
    %1996 = vmatpush1.bf16.msra.mxu0 %v1764
    %1997 = vmatprep.subr.bf16.mxu0 %v1769
    %1998 = vmatpush1.bf16.msra.mxu0 %v1768
    %1999 = vmatprep.subr.bf16.mxu0 %v1773
    %2000 = vmatpush1.bf16.msra.mxu0 %v1772
    %2001 = vmatprep.subr.bf16.mxu0 %v1777
    %2002 = vmatpush1.bf16.msra.mxu0 %v1776
    %2003 = vmatprep.subr.bf16.mxu0 %v1781
    %2004 = vmatpush1.bf16.msra.mxu0 %v1780
    %2005 = vmatprep.subr.bf16.mxu0 %v1785
    %2006 = vmatpush1.bf16.msra.mxu0 %v1784
    %2007 = vmatprep.subr.bf16.mxu0 %v1789
    %2008 = vmatpush1.bf16.msra.mxu0 %v1788
    %2009 = vmatprep.subr.bf16.mxu0 %v1793
    %2010 = vmatpush1.bf16.msra.mxu0 %v1792
    %2011 = vmatprep.subr.bf16.mxu0 %v1797
    %2012 = vmatpush1.bf16.msra.mxu0 %v1796
    %2013 = vmatprep.subr.bf16.mxu0 %v1801
    %2014 = vmatpush1.bf16.msra.mxu0 %v1800
    %2015 = vmatprep.subr.bf16.mxu0 %v1805
    %2016 = vmatpush1.bf16.msra.mxu0 %v1804
    %2017 = vmatprep.subr.bf16.mxu0 %v1809
    %2018 = vmatpush1.bf16.msra.mxu0 %v1808
    %2019 = vmatprep.subr.bf16.mxu0 %v1813
    %2020 = vmatpush1.bf16.msra.mxu0 %v1812
    %2021 = vmatprep.subr.bf16.mxu0 %v1817
    %2022 = vmatpush1.bf16.msra.mxu0 %v1816
    %2023 = vmatprep.subr.bf16.mxu0 %v1821
    %2024 = vmatpush1.bf16.msra.mxu0 %v1820
    %2025 = vmatprep.mubr.bf16.mxu0 %v1161
    %2026 = vmatmul.mubr.bf16.gmra.mrb[0].mxu0 %v1160
    %v2027 = vpop.f32.mrb[0].mxu0
    %v2028 = vadd.f32 %v1987, %v2027
    %v2029 = vpop.f32.mrb[0].mxu0
    %v2030 = vadd.f32 %v1989, %v2029
    %v2031 = vpop.f32.mrb[0].mxu0
    %v2032 = vpop.f32.mrb[0].mxu0
    %2033 = vdwg.mxu0
    %2034 = vmatprep.subr.bf16.mxu0 %v1699
    %2035 = vmatpush1.bf16.msra.mxu0 %v1698
    %2036 = vmatprep.subr.bf16.mxu0 %v1703
    %2037 = vmatpush1.bf16.msra.mxu0 %v1702
    %2038 = vmatprep.subr.bf16.mxu0 %v1707
    %2039 = vmatpush1.bf16.msra.mxu0 %v1706
    %2040 = vmatprep.subr.bf16.mxu0 %v1711
    %2041 = vmatpush1.bf16.msra.mxu0 %v1710
    %2042 = vmatprep.subr.bf16.mxu0 %v1715
    %2043 = vmatpush1.bf16.msra.mxu0 %v1714
    %2044 = vmatprep.subr.bf16.mxu0 %v1719
    %2045 = vmatpush1.bf16.msra.mxu0 %v1718
    %2046 = vmatprep.subr.bf16.mxu0 %v1723
    %2047 = vmatpush1.bf16.msra.mxu0 %v1722
    %2048 = vmatprep.subr.bf16.mxu0 %v1727
    %2049 = vmatpush1.bf16.msra.mxu0 %v1726
    %2050 = vmatprep.subr.bf16.mxu0 %v1731
    %2051 = vmatpush1.bf16.msra.mxu0 %v1730
    %2052 = vmatprep.subr.bf16.mxu0 %v1735
    %2053 = vmatpush1.bf16.msra.mxu0 %v1734
    %2054 = vmatprep.subr.bf16.mxu0 %v1739
    %2055 = vmatpush1.bf16.msra.mxu0 %v1738
    %2056 = vmatprep.subr.bf16.mxu0 %v1743
    %2057 = vmatpush1.bf16.msra.mxu0 %v1742
    %2058 = vmatprep.subr.bf16.mxu0 %v1747
    %2059 = vmatpush1.bf16.msra.mxu0 %v1746
    %2060 = vmatprep.subr.bf16.mxu0 %v1751
    %2061 = vmatpush1.bf16.msra.mxu0 %v1750
    %2062 = vmatprep.subr.bf16.mxu0 %v1755
    %2063 = vmatpush1.bf16.msra.mxu0 %v1754
    %2064 = vmatprep.subr.bf16.mxu0 %v1759
    %2065 = vmatpush1.bf16.msra.mxu0 %v1758
    %2066 = vmatprep.mubr.bf16.mxu0 %v1159
    %2067 = vmatmul.mubr.bf16.gmra.mrb[0].mxu0 %v1158
    %v2068 = vpop.f32.mrb[0].mxu0
    %v2069 = vadd.f32 %v1303, %v2068
    %v2070 = vpop.f32.mrb[0].mxu0
    %v2071 = vadd.f32 %v1307, %v2070
    %v2072 = vpop.f32.mrb[0].mxu0
    %v2073 = vpop.f32.mrb[0].mxu0
    %2074 = vdwg.mxu0
    %2075 = vmatprep.subr.bf16.mxu0 %v1763
    %2076 = vmatpush1.bf16.msra.mxu0 %v1762
    %2077 = vmatprep.subr.bf16.mxu0 %v1767
    %2078 = vmatpush1.bf16.msra.mxu0 %v1766
    %2079 = vmatprep.subr.bf16.mxu0 %v1771
    %2080 = vmatpush1.bf16.msra.mxu0 %v1770
    %2081 = vmatprep.subr.bf16.mxu0 %v1775
    %2082 = vmatpush1.bf16.msra.mxu0 %v1774
    %2083 = vmatprep.subr.bf16.mxu0 %v1779
    %2084 = vmatpush1.bf16.msra.mxu0 %v1778
    %2085 = vmatprep.subr.bf16.mxu0 %v1783
    %2086 = vmatpush1.bf16.msra.mxu0 %v1782
    %2087 = vmatprep.subr.bf16.mxu0 %v1787
    %2088 = vmatpush1.bf16.msra.mxu0 %v1786
    %2089 = vmatprep.subr.bf16.mxu0 %v1791
    %2090 = vmatpush1.bf16.msra.mxu0 %v1790
    %2091 = vmatprep.subr.bf16.mxu0 %v1795
    %2092 = vmatpush1.bf16.msra.mxu0 %v1794
    %2093 = vmatprep.subr.bf16.mxu0 %v1799
    %2094 = vmatpush1.bf16.msra.mxu0 %v1798
    %2095 = vmatprep.subr.bf16.mxu0 %v1803
    %2096 = vmatpush1.bf16.msra.mxu0 %v1802
    %2097 = vmatprep.subr.bf16.mxu0 %v1807
    %2098 = vmatpush1.bf16.msra.mxu0 %v1806
    %2099 = vmatprep.subr.bf16.mxu0 %v1811
    %2100 = vmatpush1.bf16.msra.mxu0 %v1810
    %2101 = vmatprep.subr.bf16.mxu0 %v1815
    %2102 = vmatpush1.bf16.msra.mxu0 %v1814
    %2103 = vmatprep.subr.bf16.mxu0 %v1819
    %2104 = vmatpush1.bf16.msra.mxu0 %v1818
    %2105 = vmatprep.subr.bf16.mxu0 %v1823
    %2106 = vmatpush1.bf16.msra.mxu0 %v1822
    %2107 = vmatprep.mubr.bf16.mxu0 %v1161
    %2108 = vmatmul.mubr.bf16.gmra.mrb[0].mxu0 %v1160
    %v2109 = vpop.f32.mrb[0].mxu0
    %v2110 = vadd.f32 %v2069, %v2109
    %v2111 = vpop.f32.mrb[0].mxu0
    %v2112 = vadd.f32 %v2071, %v2111
    %v2113 = vpop.f32.mrb[0].mxu0
    %v2114 = vpop.f32.mrb[0].mxu0
    %2115 = vdwg.mxu0
    %v2116 = vtanh.pop %v2028
    %v2117 = vtanh.pop %v2030
    %v2118 = vtanh.pop %v2110
    %v2119 = vtanh.pop %v2112
    %v2120 = vpack.c.bf16 %v2116, %v2116
    %v2121 = vpack.c.bf16 %v2117, %v2117
    %v2122 = vpack.c.bf16 %v2118, %v2118
    %v2123 = vpack.c.bf16 %v2119, %v2119
    %v2124 = vld [vmem:[%s7] sm:$0xf]
    %v2125 = vld [vmem:[%s7 + $0x4] sm:$0xf]
    %v2126 = vld [vmem:[%s7 + $0x8] sm:$0xf]
    %v2127 = vld [vmem:[%s7 + $0xc] sm:$0xf]
    %v2128 = vld [vmem:[%s7 + $0x10] sm:$0xf]
    %v2129 = vld [vmem:[%s7 + $0x14] sm:$0xf]
    %v2130 = vld [vmem:[%s7 + $0x18] sm:$0xf]
    %v2131 = vld [vmem:[%s7 + $0x1c] sm:$0xf]
    %v2132 = vld [vmem:[%s7 + $0x20] sm:$0xf]
    %v2133 = vld [vmem:[%s7 + $0x24] sm:$0xf]
    %v2134 = vld [vmem:[%s7 + $0x28] sm:$0xf]
    %v2135 = vld [vmem:[%s7 + $0x2c] sm:$0xf]
    %v2136 = vld [vmem:[%s7 + $0x30] sm:$0xf]
    %v2137 = vld [vmem:[%s7 + $0x34] sm:$0xf]
    %v2138 = vld [vmem:[%s7 + $0x38] sm:$0xf]
    %v2139 = vld [vmem:[%s7 + $0x3c] sm:$0xf]
    %v2140 = vld [vmem:[%s7 + $0x40] sm:$0xf]
    %v2141 = vld [vmem:[%s7 + $0x44] sm:$0xf]
    %v2142 = vld [vmem:[%s7 + $0x48] sm:$0xf]
    %v2143 = vld [vmem:[%s7 + $0x4c] sm:$0xf]
    %v2144 = vld [vmem:[%s7 + $0x50] sm:$0xf]
    %v2145 = vld [vmem:[%s7 + $0x54] sm:$0xf]
    %v2146 = vld [vmem:[%s7 + $0x58] sm:$0xf]
    %v2147 = vld [vmem:[%s7 + $0x5c] sm:$0xf]
    %v2148 = vld [vmem:[%s7 + $0x60] sm:$0xf]
    %v2149 = vld [vmem:[%s7 + $0x64] sm:$0xf]
    %v2150 = vld [vmem:[%s7 + $0x68] sm:$0xf]
    %v2151 = vld [vmem:[%s7 + $0x6c] sm:$0xf]
    %v2152 = vld [vmem:[%s7 + $0x70] sm:$0xf]
    %v2153 = vld [vmem:[%s7 + $0x74] sm:$0xf]
    %v2154 = vld [vmem:[%s7 + $0x78] sm:$0xf]
    %v2155 = vld [vmem:[%s7 + $0x7c] sm:$0xf]
    %v2156 = vld [vmem:[%s7 + $0x80] sm:$0xf]
    %v2157 = vld [vmem:[%s7 + $0x84] sm:$0xf]
    %v2158 = vld [vmem:[%s7 + $0x88] sm:$0xf]
    %v2159 = vld [vmem:[%s7 + $0x8c] sm:$0xf]
    %v2160 = vld [vmem:[%s7 + $0x90] sm:$0xf]
    %v2161 = vld [vmem:[%s7 + $0x94] sm:$0xf]
    %v2162 = vld [vmem:[%s7 + $0x98] sm:$0xf]
    %v2163 = vld [vmem:[%s7 + $0x9c] sm:$0xf]
    %v2164 = vld [vmem:[%s7 + $0xa0] sm:$0xf]
    %v2165 = vld [vmem:[%s7 + $0xa4] sm:$0xf]
    %v2166 = vld [vmem:[%s7 + $0xa8] sm:$0xf]
    %v2167 = vld [vmem:[%s7 + $0xac] sm:$0xf]
    %v2168 = vld [vmem:[%s7 + $0xb0] sm:$0xf]
    %v2169 = vld [vmem:[%s7 + $0xb4] sm:$0xf]
    %v2170 = vld [vmem:[%s7 + $0xb8] sm:$0xf]
    %v2171 = vld [vmem:[%s7 + $0xbc] sm:$0xf]
    %v2172 = vld [vmem:[%s7 + $0xc0] sm:$0xf]
    %v2173 = vld [vmem:[%s7 + $0xc4] sm:$0xf]
    %v2174 = vld [vmem:[%s7 + $0xc8] sm:$0xf]
    %v2175 = vld [vmem:[%s7 + $0xcc] sm:$0xf]
    %v2176 = vld [vmem:[%s7 + $0xd0] sm:$0xf]
    %v2177 = vld [vmem:[%s7 + $0xd4] sm:$0xf]
    %v2178 = vld [vmem:[%s7 + $0xd8] sm:$0xf]
    %v2179 = vld [vmem:[%s7 + $0xdc] sm:$0xf]
    %v2180 = vld [vmem:[%s7 + $0xe0] sm:$0xf]
    %v2181 = vld [vmem:[%s7 + $0xe4] sm:$0xf]
    %v2182 = vld [vmem:[%s7 + $0xe8] sm:$0xf]
    %v2183 = vld [vmem:[%s7 + $0xec] sm:$0xf]
    %v2184 = vld [vmem:[%s7 + $0xf0] sm:$0xf]
    %v2185 = vld [vmem:[%s7 + $0xf4] sm:$0xf]
    %v2186 = vld [vmem:[%s7 + $0xf8] sm:$0xf]
    %v2187 = vld [vmem:[%s7 + $0xfc] sm:$0xf]
    %v2188 = vld [vmem:[%s8] sm:$0x1]
    %v2190 = vlaneseq
    %v2191 = vshrl.u32 %v2190, 7
    %v2192 = vsub.s32 0, %v2191
    %v2193 = vrot.slane %v2188, %v2192
    %v2259 = vunpack.c.l.b16 %v2124
    %v2260 = vunpack.c.l.b16 %v2125
    %v2261 = vunpack.c.l.b16 %v2126
    %v2262 = vunpack.c.l.b16 %v2127
    %v2263 = vunpack.c.l.b16 %v2128
    %v2264 = vunpack.c.l.b16 %v2129
    %v2265 = vunpack.c.l.b16 %v2130
    %v2266 = vunpack.c.l.b16 %v2131
    %v2267 = vunpack.c.l.b16 %v2132
    %v2268 = vunpack.c.l.b16 %v2133
    %v2269 = vunpack.c.l.b16 %v2134
    %v2270 = vunpack.c.l.b16 %v2135
    %v2271 = vunpack.c.l.b16 %v2136
    %v2272 = vunpack.c.l.b16 %v2137
    %v2273 = vunpack.c.l.b16 %v2138
    %v2274 = vunpack.c.l.b16 %v2139
    %v2275 = vunpack.c.l.b16 %v2140
    %v2276 = vunpack.c.l.b16 %v2141
    %v2277 = vunpack.c.l.b16 %v2142
    %v2278 = vunpack.c.l.b16 %v2143
    %v2279 = vunpack.c.l.b16 %v2144
    %v2280 = vunpack.c.l.b16 %v2145
    %v2281 = vunpack.c.l.b16 %v2146
    %v2282 = vunpack.c.l.b16 %v2147
    %v2283 = vunpack.c.l.b16 %v2148
    %v2284 = vunpack.c.l.b16 %v2149
    %v2285 = vunpack.c.l.b16 %v2150
    %v2286 = vunpack.c.l.b16 %v2151
    %v2287 = vunpack.c.l.b16 %v2152
    %v2288 = vunpack.c.l.b16 %v2153
    %v2289 = vunpack.c.l.b16 %v2154
    %v2290 = vunpack.c.l.b16 %v2155
    %v2291 = vunpack.c.l.b16 %v2156
    %v2292 = vunpack.c.l.b16 %v2157
    %v2293 = vunpack.c.l.b16 %v2158
    %v2294 = vunpack.c.l.b16 %v2159
    %v2295 = vunpack.c.l.b16 %v2160
    %v2296 = vunpack.c.l.b16 %v2161
    %v2297 = vunpack.c.l.b16 %v2162
    %v2298 = vunpack.c.l.b16 %v2163
    %v2299 = vunpack.c.l.b16 %v2164
    %v2300 = vunpack.c.l.b16 %v2165
    %v2301 = vunpack.c.l.b16 %v2166
    %v2302 = vunpack.c.l.b16 %v2167
    %v2303 = vunpack.c.l.b16 %v2168
    %v2304 = vunpack.c.l.b16 %v2169
    %v2305 = vunpack.c.l.b16 %v2170
    %v2306 = vunpack.c.l.b16 %v2171
    %v2307 = vunpack.c.l.b16 %v2172
    %v2308 = vunpack.c.l.b16 %v2173
    %v2309 = vunpack.c.l.b16 %v2174
    %v2310 = vunpack.c.l.b16 %v2175
    %v2311 = vunpack.c.l.b16 %v2176
    %v2312 = vunpack.c.l.b16 %v2177
    %v2313 = vunpack.c.l.b16 %v2178
    %v2314 = vunpack.c.l.b16 %v2179
    %v2315 = vunpack.c.l.b16 %v2180
    %v2316 = vunpack.c.l.b16 %v2181
    %v2317 = vunpack.c.l.b16 %v2182
    %v2318 = vunpack.c.l.b16 %v2183
    %v2319 = vunpack.c.l.b16 %v2184
    %v2320 = vunpack.c.l.b16 %v2185
    %v2321 = vunpack.c.l.b16 %v2186
    %v2322 = vunpack.c.l.b16 %v2187
    %v2323 = vpack.c.b16 %v2260, %v2259
    %v2324 = vpack.c.b16 %v2262, %v2261
    %v2325 = vpack.c.b16 %v2264, %v2263
    %v2326 = vpack.c.b16 %v2266, %v2265
    %v2327 = vpack.c.b16 %v2268, %v2267
    %v2328 = vpack.c.b16 %v2270, %v2269
    %v2329 = vpack.c.b16 %v2272, %v2271
    %v2330 = vpack.c.b16 %v2274, %v2273
    %v2331 = vpack.c.b16 %v2276, %v2275
    %v2332 = vpack.c.b16 %v2278, %v2277
    %v2333 = vpack.c.b16 %v2280, %v2279
    %v2334 = vpack.c.b16 %v2282, %v2281
    %v2335 = vpack.c.b16 %v2284, %v2283
    %v2336 = vpack.c.b16 %v2286, %v2285
    %v2337 = vpack.c.b16 %v2288, %v2287
    %v2338 = vpack.c.b16 %v2290, %v2289
    %v2339 = vpack.c.b16 %v2292, %v2291
    %v2340 = vpack.c.b16 %v2294, %v2293
    %v2341 = vpack.c.b16 %v2296, %v2295
    %v2342 = vpack.c.b16 %v2298, %v2297
    %v2343 = vpack.c.b16 %v2300, %v2299
    %v2344 = vpack.c.b16 %v2302, %v2301
    %v2345 = vpack.c.b16 %v2304, %v2303
    %v2346 = vpack.c.b16 %v2306, %v2305
    %v2347 = vpack.c.b16 %v2308, %v2307
    %v2348 = vpack.c.b16 %v2310, %v2309
    %v2349 = vpack.c.b16 %v2312, %v2311
    %v2350 = vpack.c.b16 %v2314, %v2313
    %v2351 = vpack.c.b16 %v2316, %v2315
    %v2352 = vpack.c.b16 %v2318, %v2317
    %v2353 = vpack.c.b16 %v2320, %v2319
    %v2354 = vpack.c.b16 %v2322, %v2321
    %2387 = vmatprep.subr.bf16.mxu0 0
    %2388 = vmatpush1.bf16.msra.mxu0 %v2323
    %2389 = vmatprep.subr.bf16.mxu0 0
    %2390 = vmatpush1.bf16.msra.mxu0 %v2324
    %2391 = vmatprep.subr.bf16.mxu0 0
    %2392 = vmatpush1.bf16.msra.mxu0 %v2325
    %2393 = vmatprep.subr.bf16.mxu0 0
    %2394 = vmatpush1.bf16.msra.mxu0 %v2326
    %2395 = vmatprep.subr.bf16.mxu0 0
    %2396 = vmatpush1.bf16.msra.mxu0 %v2327
    %2397 = vmatprep.subr.bf16.mxu0 0
    %2398 = vmatpush1.bf16.msra.mxu0 %v2328
    %2399 = vmatprep.subr.bf16.mxu0 0
    %2400 = vmatpush1.bf16.msra.mxu0 %v2329
    %2401 = vmatprep.subr.bf16.mxu0 0
    %2402 = vmatpush1.bf16.msra.mxu0 %v2330
    %2403 = vmatprep.subr.bf16.mxu0 0
    %2404 = vmatpush1.bf16.msra.mxu0 %v2331
    %2405 = vmatprep.subr.bf16.mxu0 0
    %2406 = vmatpush1.bf16.msra.mxu0 %v2332
    %2407 = vmatprep.subr.bf16.mxu0 0
    %2408 = vmatpush1.bf16.msra.mxu0 %v2333
    %2409 = vmatprep.subr.bf16.mxu0 0
    %2410 = vmatpush1.bf16.msra.mxu0 %v2334
    %2411 = vmatprep.subr.bf16.mxu0 0
    %2412 = vmatpush1.bf16.msra.mxu0 %v2335
    %2413 = vmatprep.subr.bf16.mxu0 0
    %2414 = vmatpush1.bf16.msra.mxu0 %v2336
    %2415 = vmatprep.subr.bf16.mxu0 0
    %2416 = vmatpush1.bf16.msra.mxu0 %v2337
    %2417 = vmatprep.subr.bf16.mxu0 0
    %2418 = vmatpush1.bf16.msra.mxu0 %v2338
    %2419 = vmatprep.mubr.bf16.mxu0 %v2121
    %2420 = vmatmul.mubr.bf16.gmra.mrb[0].mxu0 %v2120
    %v2421 = vpop.f32.mrb[0].mxu0
    %v2422 = vadd.f32 %v2193, %v2421
    %v2423 = vpop.f32.mrb[0].mxu0
    %v2424 = vpop.f32.mrb[0].mxu0
    %v2425 = vpop.f32.mrb[0].mxu0
    %2426 = vdwg.mxu0
    %2427 = vmatprep.subr.bf16.mxu0 0
    %2428 = vmatpush1.bf16.msra.mxu0 %v2339
    %2429 = vmatprep.subr.bf16.mxu0 0
    %2430 = vmatpush1.bf16.msra.mxu0 %v2340
    %2431 = vmatprep.subr.bf16.mxu0 0
    %2432 = vmatpush1.bf16.msra.mxu0 %v2341
    %2433 = vmatprep.subr.bf16.mxu0 0
    %2434 = vmatpush1.bf16.msra.mxu0 %v2342
    %2435 = vmatprep.subr.bf16.mxu0 0
    %2436 = vmatpush1.bf16.msra.mxu0 %v2343
    %2437 = vmatprep.subr.bf16.mxu0 0
    %2438 = vmatpush1.bf16.msra.mxu0 %v2344
    %2439 = vmatprep.subr.bf16.mxu0 0
    %2440 = vmatpush1.bf16.msra.mxu0 %v2345
    %2441 = vmatprep.subr.bf16.mxu0 0
    %2442 = vmatpush1.bf16.msra.mxu0 %v2346
    %2443 = vmatprep.subr.bf16.mxu0 0
    %2444 = vmatpush1.bf16.msra.mxu0 %v2347
    %2445 = vmatprep.subr.bf16.mxu0 0
    %2446 = vmatpush1.bf16.msra.mxu0 %v2348
    %2447 = vmatprep.subr.bf16.mxu0 0
    %2448 = vmatpush1.bf16.msra.mxu0 %v2349
    %2449 = vmatprep.subr.bf16.mxu0 0
    %2450 = vmatpush1.bf16.msra.mxu0 %v2350
    %2451 = vmatprep.subr.bf16.mxu0 0
    %2452 = vmatpush1.bf16.msra.mxu0 %v2351
    %2453 = vmatprep.subr.bf16.mxu0 0
    %2454 = vmatpush1.bf16.msra.mxu0 %v2352
    %2455 = vmatprep.subr.bf16.mxu0 0
    %2456 = vmatpush1.bf16.msra.mxu0 %v2353
    %2457 = vmatprep.subr.bf16.mxu0 0
    %2458 = vmatpush1.bf16.msra.mxu0 %v2354
    %2459 = vmatprep.mubr.bf16.mxu0 %v2123
    %2460 = vmatmul.mubr.bf16.gmra.mrb[0].mxu0 %v2122
    %v2461 = vpop.f32.mrb[0].mxu0
    %v2462 = vadd.f32 %v2422, %v2461
    %v2463 = vpop.f32.mrb[0].mxu0
    %v2464 = vpop.f32.mrb[0].mxu0
    %v2465 = vpop.f32.mrb[0].mxu0
    %2466 = vdwg.mxu0
    %2467 = vst [vmem:[#allocation2] sm:$0xff] %v2462
    // Predicated region
    $region38: #{decoder_forward.1} parent=1 // pred_check
      _
    $region39: #{decoder_forward.1} parent=1 // pred_check_branch
      %2469 = sbr.rel (0) target = $region41
    $region40: #{decoder_forward.1} parent=1 // pred_region
      %s2471 = ssub.s32 128, 128
      %2472 = vsyncadd [#allocation3], %s2471
      %s2474 = sshll.u32 [#allocation2], 4
      %s2475 = int_to_ptr.vmem [resolvable:$true] %s2474
      %2477 = dma.vmem_to_hbm [thread:$0]  %s2475, 128, %s9, [#allocation3]
    $region41: #{decoder_forward.1} parent=1 // pred_fallthru
      _
    // Predicated region
    $region42: #{decoder_forward.1} parent=1 // pred_check
      _
    $region43: #{decoder_forward.1} parent=1 // pred_check_branch
      %2479 = sbr.rel (0) target = $region45
    $region44: #{decoder_forward.1} parent=1 // pred_region
      %2480 = dma.done [#allocation3], 128
    $region45: #{decoder_forward.1} parent=1 // pred_fallthru
      _
    %2481 = vsyncpa [#allocation3], 1

</llo_original>
